<compile_context>
chip_gen: v7x
topology: tpu7x:2x2x1
jax: 0.10.0
libtpu: 0.0.40
codegen_flags: <defaults>
</compile_context>

<pallas_src>
import functools

import jax
import jax.numpy as jnp
from jax import lax
from jax.experimental import pallas as pl
from jax.experimental.pallas import tpu as pltpu

CH_ALIGN = 16          # channel padding -> every slab row band is bf16-tile aligned


def _round_up(x, m):
    return (x + m - 1) // m * m


def _lrelu(x, slope=0.01):          # nn.LeakyReLU default negative_slope
    return jnp.where(x >= 0, x, slope * x)


# ----------------------------- fused kernel -----------------------------

def _fused_tcn_kernel(x_ref, w_ref, c_ref, m_ref, o_ref, *, layer_meta, shift_row):
    """One grid step = Nb samples through the whole TemporalBlock stack.

    x_ref : (cin0_p, Nb*L) f32   activations, Nb samples side by side on lanes
    w_ref : (Wr, Wc)       bf16  folded conv / downsample weights (row bands)
    c_ref : (Cr, 1)        f32   folded per-channel shifts (bias+BN) / ds bias
    m_ref : (Mr, Nb*L)     f32   0/1 causal masks, one row per distinct shift s
    o_ref : (cout_p, Nb*L) f32
    """

    def tap(x, s):
        # causal time shift: out[:, t] = x[:, t-s], zeroed where (t mod L) < s
        # (per-sample causal zero pad; also kills cross-sample lane leakage).
        if s == 0:
            return x.astype(jnp.bfloat16)
        r = pltpu.roll(x, shift=s, axis=1)                     # XLU, not MXU
        row = shift_row[s]
        return (r * m_ref[row:row + 1, :]).astype(jnp.bfloat16)

    def causal_conv(x, m, w_off, cin_p):
        # K accumulating MXU dots; bias/BN already folded into weights + shift.
        acc = None
        for j in range(m["ksize"]):
            s = (m["ksize"] - 1 - j) * m["dilation"]
            wj = w_ref[w_off:w_off + m["cout_p"], j * cin_p:(j + 1) * cin_p]
            p = jnp.dot(wj, tap(x, s), preferred_element_type=jnp.float32)
            acc = p if acc is None else acc + p
        return acc

    h = x_ref[...]                                             # (cin0_p, Nb*L)
    for m in layer_meta:
        x_in = h
        # conv1 -> chomp -> (bn1) -> lrelu
        c1 = c_ref[m["c1_off"]:m["c1_off"] + m["cout_p"], :]
        y = _lrelu(causal_conv(x_in, m, m["w1_off"], m["cin_p"]) + c1)
        # conv2 -> chomp -> (bn2) -> lrelu
        c2 = c_ref[m["c2_off"]:m["c2_off"] + m["cout_p"], :]
        y = _lrelu(causal_conv(y, m, m["w2_off"], m["cout_p"]) + c2)
        # residual path
        if m["has_ds"]:
            wd = w_ref[m["wd_off"]:m["wd_off"] + m["cout_p"], :m["cin_p"]]
            bd = c_ref[m["bd_off"]:m["bd_off"] + m["cout_p"], :]
            res = jnp.dot(wd, x_in.astype(jnp.bfloat16),
                          preferred_element_type=jnp.float32) + bd
        else:
            res = x_in
        h = _lrelu(y + res)
    o_ref[...] = h


# ----------------------------- wrappers -----------------------------

def _build_masks(layer_meta, nb, L):
    """0/1 causal masks, one row per distinct nonzero shift (hoisted constants)."""
    shifts = sorted({(m["ksize"] - 1 - j) * m["dilation"]
                     for m in layer_meta for j in range(m["ksize"])} - {0})
    shift_row = {s: r for r, s in enumerate(shifts)}
    t = jnp.arange(nb * L, dtype=jnp.int32) % L
    rows = [(t >= s).astype(jnp.float32) for s in shifts]
    if not rows:
        rows = [jnp.ones((nb * L,), jnp.float32)]
    masks = jnp.stack(rows, axis=0)
    pad = _round_up(masks.shape[0], 8) - masks.shape[0]
    masks = jnp.pad(masks, ((0, pad), (0, 0)))
    return masks, shift_row


def tcn_vae_decoder(x, packed, layer_meta, *, nb=2):
    """x: (N, input_dim, L) f32 -> (N, channels_list[-1], L) f32; one pallas_call."""
    w_slab, c_slab = packed
    N, cin0, L = x.shape
    cin0_p = layer_meta[0]["cin_p"]
    cout_p = layer_meta[-1]["cout_p"]

    # pad batch to a multiple of nb, pad input channels, then lay nb samples
    # side-by-side on the lane axis: (g, cin0_p, nb*L)
    n_pad = _round_up(max(N, nb), nb)
    xp = jnp.pad(x, ((0, n_pad - N), (0, cin0_p - cin0), (0, 0)))
    g = n_pad // nb
    xw = xp.reshape(g, nb, cin0_p, L).transpose(0, 2, 1, 3).reshape(g, cin0_p, nb * L)

    masks, shift_row = _build_masks(layer_meta, nb, L)

    kernel = functools.partial(_fused_tcn_kernel, layer_meta=layer_meta,
                               shift_row=shift_row)
    out = pl.pallas_call(
        kernel,
        out_shape=jax.ShapeDtypeStruct((g, cout_p, nb * L), jnp.float32),
        grid=(g,),
        in_specs=[
            pl.BlockSpec((pl.Squeezed(), cin0_p, nb * L), lambda n: (n, 0, 0)),
            pl.BlockSpec(w_slab.shape, lambda n: (0, 0)),   # resident constants
            pl.BlockSpec(c_slab.shape, lambda n: (0, 0)),
            pl.BlockSpec(masks.shape, lambda n: (0, 0)),
        ],
        out_specs=pl.BlockSpec((pl.Squeezed(), cout_p, nb * L), lambda n: (n, 0, 0)),
        compiler_params=pltpu.CompilerParams(
            dimension_semantics=("parallel",),   # v7x: fat steps shard over both TCs
            vmem_limit_bytes=32 * 1024 * 1024),
    )(xw, w_slab, c_slab, masks)

    out = out.reshape(g, cout_p, nb, L).transpose(0, 2, 1, 3).reshape(n_pad, cout_p, L)
    return out[:N, :layer_meta[-1]["cout"], :]


# ----------------------------- parameter setup (glue) -----------------------------

def init_raw_params(key, input_dim, channels_list, ksize):
    """PyTorch-equivalent TemporalBlock params in torch layouts (eval-mode BN)."""
    raw = []
    n = len(channels_list)
    eps = 1e-5
    for i, cout in enumerate(channels_list):
        cin = input_dim if i == 0 else channels_list[i - 1]
        key, k1, k2, k3, k4, k5, k6 = jax.random.split(key, 7)

        def conv_init(kw, kb, ci, co):
            # weight_norm with g = ||v|| at init folds to w == v ~ N(0, 0.01)
            v = 0.01 * jax.random.normal(kw, (co, ci, ksize), dtype=jnp.float32)
            bound = 1.0 / jnp.sqrt(jnp.float32(ci * ksize))
            b = jax.random.uniform(kb, (co,), jnp.float32, -bound, bound)
            return v, b

        w1, b1 = conv_init(k1, k2, cin, cout)
        w2, b2 = conv_init(k3, k4, cout, cout)

        use_bn = i != n - 1        # last block: last_norm=True -> no BatchNorm
        if use_bn:                 # eval-mode BN with default running stats
            bscale = jnp.full((cout,), 1.0 / jnp.sqrt(1.0 + eps), jnp.float32)
        else:
            bscale = jnp.ones((cout,), jnp.float32)
        bshift = jnp.zeros((cout,), jnp.float32)

        p = dict(w1=w1, b1=b1, w2=w2, b2=b2,
                 s1=bscale, t1=bshift, s2=bscale, t2=bshift,
                 cin=cin, cout=cout)
        if cin != cout:            # 1x1 downsample conv
            wd = 0.01 * jax.random.normal(k5, (cout, cin), dtype=jnp.float32)
            bound = 1.0 / jnp.sqrt(jnp.float32(cin))
            bd = jax.random.uniform(k6, (cout,), jnp.float32, -bound, bound)
            p.update(wd=wd, bd=bd)
        raw.append(p)
    return raw


def pack_params(raw, dilation_list, ksize):
    """Fold bias + eval-mode BN into (scaled weights, shift), flatten taps, pad
    channels to CH_ALIGN, and pack everything into two flat slabs:
      weight slab (bf16): row bands [w1 | w2 | (wd)] per layer
      shift  slab (f32) : row bands [c1 | c2 | (bd)] per layer
    """
    layer_meta, w_blocks, c_blocks = [], [], []
    w_off = c_off = 0
    max_wc = 0
    for i, rp in enumerate(raw):
        cin, cout = rp["cin"], rp["cout"]
        cin_p, cout_p = _round_up(cin, CH_ALIGN), _round_up(cout, CH_ALIGN)
        d = int(dilation_list[i])

        def fold_w(w, scale, ci, ci_p):
            # (cout, ci, K) -> (cout_p, K*ci_p); [co, j*ci_p + c] = scale[co]*w[co,c,j]
            wp = jnp.zeros((cout_p, ci_p, ksize), jnp.float32)
            wp = wp.at[:cout, :ci, :].set(w * scale[:, None, None])
            return jnp.transpose(wp, (0, 2, 1)).reshape(cout_p, ksize * ci_p)

        def fold_c(b, scale, shift):
            return jnp.zeros((cout_p, 1), jnp.float32).at[:cout, 0].set(scale * b + shift)

        w1 = fold_w(rp["w1"], rp["s1"], cin, cin_p)
        w2 = fold_w(rp["w2"], rp["s2"], cout, cout_p)
        c1 = fold_c(rp["b1"], rp["s1"], rp["t1"])
        c2 = fold_c(rp["b2"], rp["s2"], rp["t2"])

        meta = dict(ksize=ksize, dilation=d, cin_p=cin_p, cout_p=cout_p,
                    cout=cout, has_ds=cin != cout,
                    w1_off=w_off, w2_off=w_off + cout_p,
                    c1_off=c_off, c2_off=c_off + cout_p)
        w_blocks += [w1, w2]
        c_blocks += [c1, c2]
        w_off += 2 * cout_p
        c_off += 2 * cout_p
        max_wc = max(max_wc, w1.shape[1], w2.shape[1])
        if meta["has_ds"]:
            wd = jnp.zeros((cout_p, cin_p), jnp.float32).at[:cout, :cin].set(rp["wd"])
            bd = jnp.zeros((cout_p, 1), jnp.float32).at[:cout, 0].set(rp["bd"])
            meta["wd_off"], meta["bd_off"] = w_off, c_off
            w_blocks.append(wd)
            c_blocks.append(bd)
            w_off += cout_p
            c_off += cout_p
            max_wc = max(max_wc, cin_p)
        layer_meta.append(meta)

    w_cols = _round_up(max_wc, 128)                       # lane-dense weight slab
    w_slab = jnp.zeros((_round_up(w_off, CH_ALIGN), w_cols), jnp.float32)
    c_slab = jnp.zeros((_round_up(c_off, 8), 1), jnp.float32)
    r = 0
    for blk in w_blocks:
        w_slab = w_slab.at[r:r + blk.shape[0], :blk.shape[1]].set(blk)
        r += blk.shape[0]
    r = 0
    for blk in c_blocks:
        c_slab = c_slab.at[r:r + blk.shape[0], :].set(blk)
        r += blk.shape[0]
    return (w_slab.astype(jnp.bfloat16), c_slab), layer_meta


# ----------------------------- pure-JAX reference (sanity check) -----------------------------

def reference_tcn(x, raw, dilation_list, ksize):
    h = x
    for i, rp in enumerate(raw):
        d = int(dilation_list[i])
        pad = (ksize - 1) * d
        L = h.shape[-1]

        def conv(inp, w, b):
            out = lax.conv_general_dilated(
                inp, w, window_strides=(1,), padding=[(pad, pad)],
                rhs_dilation=(d,), dimension_numbers=("NCH", "OIH", "NCH"))
            return out[:, :, :L] + b[None, :, None]          # Chomp1d + bias

        y = _lrelu(conv(h, rp["w1"], rp["b1"]) * rp["s1"][None, :, None]
                   + rp["t1"][None, :, None])
        y = _lrelu(conv(y, rp["w2"], rp["b2"]) * rp["s2"][None, :, None]
                   + rp["t2"][None, :, None])
        if "wd" in rp:
            res = jnp.einsum("oc,ncl->nol", rp["wd"], h) + rp["bd"][None, :, None]
        else:
            res = h
        h = _lrelu(y + res)
    return h


# ----------------------------- main -----------------------------

if __name__ == "__main__":
    N, input_dim, L = 4, 4, 128
    channels_list = [8, 16]
    dilation_list = [1, 2]
    ksize = 3
    nb = 2                       # samples per grid step -> grid = N/nb = 2

    x = jax.random.normal(jax.random.PRNGKey(0), (N, input_dim, L), dtype=jnp.float32)
    raw = init_raw_params(jax.random.PRNGKey(1), input_dim, channels_list, ksize)
    packed, layer_meta = pack_params(raw, dilation_list, ksize)

    out = tcn_vae_decoder(x, packed, layer_meta, nb=nb)
    out = jax.block_until_ready(out)

    assert out.shape == (N, channels_list[-1], L), out.shape
    assert bool(jnp.all(jnp.isfinite(out)))

    ref = reference_tcn(x, raw, dilation_list, ksize)
    # bf16 MXU operands -> slightly looser tolerance than pure f32
    assert bool(jnp.allclose(out, ref, rtol=2e-2, atol=5e-3)), (
        float(jnp.max(jnp.abs(out - ref))))

    print("KERNEL_OK")
</pallas_src>

<mosaic_0001>
module attributes {stable_mosaic.version = 11 : i64} {
  func.func @_fused_tcn_kernel(%arg0: i32, %arg1: memref<1x16x256xf32, #tpu.memory_space<vmem>>, %arg2: memref<96x128xbf16, #tpu.memory_space<vmem>>, %arg3: memref<96x1xf32, #tpu.memory_space<vmem>>, %arg4: memref<8x256xf32, #tpu.memory_space<vmem>>, %arg5: memref<1x16x256xf32, #tpu.memory_space<vmem>>) attributes {dimension_semantics = [#tpu.dimension_semantics<parallel>], iteration_bounds = array<i64: 2>, scalar_prefetch = 0 : i64, scratch_operands = 0 : i64, tpu.core_type = #tpu.core_type<tc>, window_params = [{transform_indices = @transform_0, window_bounds = array<i64: 1, 16, 256>}, {pipeline_mode = #tpu.pipeline_mode<synchronous>, transform_indices = @transform_1, window_bounds = array<i64: 96, 128>}, {pipeline_mode = #tpu.pipeline_mode<synchronous>, transform_indices = @transform_2, window_bounds = array<i64: 96, 1>}, {pipeline_mode = #tpu.pipeline_mode<synchronous>, transform_indices = @transform_3, window_bounds = array<i64: 8, 256>}, {transform_indices = @transform_4, window_bounds = array<i64: 1, 16, 256>}]} {
    %c0 = arith.constant 0 : index
    %c0_0 = arith.constant 0 : index
    %c0_1 = arith.constant 0 : index
    %0 = vector.load %arg1[%c0, %c0_0, %c0_1] : memref<1x16x256xf32, #tpu.memory_space<vmem>>, vector<1x16x256xf32>
    %1 = vector.shape_cast %0 : vector<1x16x256xf32> to vector<16x256xf32>
    %c0_2 = arith.constant 0 : index
    %c0_3 = arith.constant 0 : index
    %2 = vector.load %arg3[%c0_2, %c0_3] : memref<96x1xf32, #tpu.memory_space<vmem>>, vector<16x1xf32>
    %c0_4 = arith.constant 0 : index
    %c0_5 = arith.constant 0 : index
    %3 = vector.load %arg2[%c0_4, %c0_5] : memref<96x128xbf16, #tpu.memory_space<vmem>>, vector<16x16xbf16>
    %c2_i32 = arith.constant 2 : i32
    %4 = tpu.dynamic_rotate %1 by %c2_i32 dim 1 : vector<16x256xf32>, i32 -> vector<16x256xf32>
    %c1 = arith.constant 1 : index
    %c0_6 = arith.constant 0 : index
    %5 = vector.load %arg4[%c1, %c0_6] : memref<8x256xf32, #tpu.memory_space<vmem>>, vector<1x256xf32>
    %6 = vector.broadcast %5 : vector<1x256xf32> to vector<16x256xf32>
    %7 = arith.mulf %4, %6 : vector<16x256xf32>
    %8 = arith.truncf %7 : vector<16x256xf32> to vector<16x256xbf16>
    %cst = arith.constant dense<0.000000e+00> : vector<16x256xf32>
    %9 = tpu.matmul %3, %8, %cst {dimension_numbers = #tpu.dot_dimension_numbers<[1], [0], [0], [1], [0, 0, 1, 1], [], []>} : vector<16x16xbf16>, vector<16x256xbf16>, vector<16x256xf32> -> vector<16x256xf32>
    %c0_7 = arith.constant 0 : index
    %c16 = arith.constant 16 : index
    %10 = vector.load %arg2[%c0_7, %c16] : memref<96x128xbf16, #tpu.memory_space<vmem>>, vector<16x16xbf16>
    %c1_i32 = arith.constant 1 : i32
    %11 = tpu.dynamic_rotate %1 by %c1_i32 dim 1 : vector<16x256xf32>, i32 -> vector<16x256xf32>
    %c0_8 = arith.constant 0 : index
    %c0_9 = arith.constant 0 : index
    %12 = vector.load %arg4[%c0_8, %c0_9] : memref<8x256xf32, #tpu.memory_space<vmem>>, vector<1x256xf32>
    %13 = vector.broadcast %12 : vector<1x256xf32> to vector<16x256xf32>
    %14 = arith.mulf %11, %13 : vector<16x256xf32>
    %15 = arith.truncf %14 : vector<16x256xf32> to vector<16x256xbf16>
    %cst_10 = arith.constant dense<0.000000e+00> : vector<16x256xf32>
    %16 = tpu.matmul %10, %15, %cst_10 {dimension_numbers = #tpu.dot_dimension_numbers<[1], [0], [0], [1], [0, 0, 1, 1], [], []>} : vector<16x16xbf16>, vector<16x256xbf16>, vector<16x256xf32> -> vector<16x256xf32>
    %17 = arith.addf %9, %16 : vector<16x256xf32>
    %c0_11 = arith.constant 0 : index
    %c32 = arith.constant 32 : index
    %18 = vector.load %arg2[%c0_11, %c32] : memref<96x128xbf16, #tpu.memory_space<vmem>>, vector<16x16xbf16>
    %19 = arith.truncf %1 : vector<16x256xf32> to vector<16x256xbf16>
    %cst_12 = arith.constant dense<0.000000e+00> : vector<16x256xf32>
    %20 = tpu.matmul %18, %19, %cst_12 {dimension_numbers = #tpu.dot_dimension_numbers<[1], [0], [0], [1], [0, 0, 1, 1], [], []>} : vector<16x16xbf16>, vector<16x256xbf16>, vector<16x256xf32> -> vector<16x256xf32>
    %21 = arith.addf %17, %20 : vector<16x256xf32>
    %22 = vector.broadcast %2 : vector<16x1xf32> to vector<16x256xf32>
    %23 = arith.addf %21, %22 : vector<16x256xf32>
    %cst_13 = arith.constant 0.000000e+00 : f32
    %24 = vector.broadcast %cst_13 : f32 to vector<16x256xf32>
    %25 = arith.cmpf oge, %23, %24 : vector<16x256xf32>
    %cst_14 = arith.constant 0.00999999977 : f32
    %26 = vector.broadcast %cst_14 : f32 to vector<16x256xf32>
    %27 = arith.mulf %26, %23 : vector<16x256xf32>
    %28 = arith.select %25, %23, %27 : vector<16x256xi1>, vector<16x256xf32>
    %c16_15 = arith.constant 16 : index
    %c0_16 = arith.constant 0 : index
    %29 = vector.load %arg3[%c16_15, %c0_16] : memref<96x1xf32, #tpu.memory_space<vmem>>, vector<16x1xf32>
    %c16_17 = arith.constant 16 : index
    %c0_18 = arith.constant 0 : index
    %30 = vector.load %arg2[%c16_17, %c0_18] : memref<96x128xbf16, #tpu.memory_space<vmem>>, vector<16x16xbf16>
    %c2_i32_19 = arith.constant 2 : i32
    %31 = tpu.dynamic_rotate %28 by %c2_i32_19 dim 1 : vector<16x256xf32>, i32 -> vector<16x256xf32>
    %c1_20 = arith.constant 1 : index
    %c0_21 = arith.constant 0 : index
    %32 = vector.load %arg4[%c1_20, %c0_21] : memref<8x256xf32, #tpu.memory_space<vmem>>, vector<1x256xf32>
    %33 = vector.broadcast %32 : vector<1x256xf32> to vector<16x256xf32>
    %34 = arith.mulf %31, %33 : vector<16x256xf32>
    %35 = arith.truncf %34 : vector<16x256xf32> to vector<16x256xbf16>
    %cst_22 = arith.constant dense<0.000000e+00> : vector<16x256xf32>
    %36 = tpu.matmul %30, %35, %cst_22 {dimension_numbers = #tpu.dot_dimension_numbers<[1], [0], [0], [1], [0, 0, 1, 1], [], []>} : vector<16x16xbf16>, vector<16x256xbf16>, vector<16x256xf32> -> vector<16x256xf32>
    %c16_23 = arith.constant 16 : index
    %c16_24 = arith.constant 16 : index
    %37 = vector.load %arg2[%c16_23, %c16_24] : memref<96x128xbf16, #tpu.memory_space<vmem>>, vector<16x16xbf16>
    %c1_i32_25 = arith.constant 1 : i32
    %38 = tpu.dynamic_rotate %28 by %c1_i32_25 dim 1 : vector<16x256xf32>, i32 -> vector<16x256xf32>
    %c0_26 = arith.constant 0 : index
    %c0_27 = arith.constant 0 : index
    %39 = vector.load %arg4[%c0_26, %c0_27] : memref<8x256xf32, #tpu.memory_space<vmem>>, vector<1x256xf32>
    %40 = vector.broadcast %39 : vector<1x256xf32> to vector<16x256xf32>
    %41 = arith.mulf %38, %40 : vector<16x256xf32>
    %42 = arith.truncf %41 : vector<16x256xf32> to vector<16x256xbf16>
    %cst_28 = arith.constant dense<0.000000e+00> : vector<16x256xf32>
    %43 = tpu.matmul %37, %42, %cst_28 {dimension_numbers = #tpu.dot_dimension_numbers<[1], [0], [0], [1], [0, 0, 1, 1], [], []>} : vector<16x16xbf16>, vector<16x256xbf16>, vector<16x256xf32> -> vector<16x256xf32>
    %44 = arith.addf %36, %43 : vector<16x256xf32>
    %c16_29 = arith.constant 16 : index
    %c32_30 = arith.constant 32 : index
    %45 = vector.load %arg2[%c16_29, %c32_30] : memref<96x128xbf16, #tpu.memory_space<vmem>>, vector<16x16xbf16>
    %46 = arith.truncf %28 : vector<16x256xf32> to vector<16x256xbf16>
    %cst_31 = arith.constant dense<0.000000e+00> : vector<16x256xf32>
    %47 = tpu.matmul %45, %46, %cst_31 {dimension_numbers = #tpu.dot_dimension_numbers<[1], [0], [0], [1], [0, 0, 1, 1], [], []>} : vector<16x16xbf16>, vector<16x256xbf16>, vector<16x256xf32> -> vector<16x256xf32>
    %48 = arith.addf %44, %47 : vector<16x256xf32>
    %49 = vector.broadcast %29 : vector<16x1xf32> to vector<16x256xf32>
    %50 = arith.addf %48, %49 : vector<16x256xf32>
    %cst_32 = arith.constant 0.000000e+00 : f32
    %51 = vector.broadcast %cst_32 : f32 to vector<16x256xf32>
    %52 = arith.cmpf oge, %50, %51 : vector<16x256xf32>
    %cst_33 = arith.constant 0.00999999977 : f32
    %53 = vector.broadcast %cst_33 : f32 to vector<16x256xf32>
    %54 = arith.mulf %53, %50 : vector<16x256xf32>
    %55 = arith.select %52, %50, %54 : vector<16x256xi1>, vector<16x256xf32>
    %c32_34 = arith.constant 32 : index
    %c0_35 = arith.constant 0 : index
    %56 = vector.load %arg2[%c32_34, %c0_35] : memref<96x128xbf16, #tpu.memory_space<vmem>>, vector<16x16xbf16>
    %c32_36 = arith.constant 32 : index
    %c0_37 = arith.constant 0 : index
    %57 = vector.load %arg3[%c32_36, %c0_37] : memref<96x1xf32, #tpu.memory_space<vmem>>, vector<16x1xf32>
    %58 = arith.truncf %1 : vector<16x256xf32> to vector<16x256xbf16>
    %cst_38 = arith.constant dense<0.000000e+00> : vector<16x256xf32>
    %59 = tpu.matmul %56, %58, %cst_38 {dimension_numbers = #tpu.dot_dimension_numbers<[1], [0], [0], [1], [0, 0, 1, 1], [], []>} : vector<16x16xbf16>, vector<16x256xbf16>, vector<16x256xf32> -> vector<16x256xf32>
    %60 = vector.broadcast %57 : vector<16x1xf32> to vector<16x256xf32>
    %61 = arith.addf %59, %60 : vector<16x256xf32>
    %62 = arith.addf %55, %61 : vector<16x256xf32>
    %cst_39 = arith.constant 0.000000e+00 : f32
    %63 = vector.broadcast %cst_39 : f32 to vector<16x256xf32>
    %64 = arith.cmpf oge, %62, %63 : vector<16x256xf32>
    %cst_40 = arith.constant 0.00999999977 : f32
    %65 = vector.broadcast %cst_40 : f32 to vector<16x256xf32>
    %66 = arith.mulf %65, %62 : vector<16x256xf32>
    %67 = arith.select %64, %62, %66 : vector<16x256xi1>, vector<16x256xf32>
    %c48 = arith.constant 48 : index
    %c0_41 = arith.constant 0 : index
    %68 = vector.load %arg3[%c48, %c0_41] : memref<96x1xf32, #tpu.memory_space<vmem>>, vector<16x1xf32>
    %c48_42 = arith.constant 48 : index
    %c0_43 = arith.constant 0 : index
    %69 = vector.load %arg2[%c48_42, %c0_43] : memref<96x128xbf16, #tpu.memory_space<vmem>>, vector<16x16xbf16>
    %c4_i32 = arith.constant 4 : i32
    %70 = tpu.dynamic_rotate %67 by %c4_i32 dim 1 : vector<16x256xf32>, i32 -> vector<16x256xf32>
    %c2 = arith.constant 2 : index
    %c0_44 = arith.constant 0 : index
    %71 = vector.load %arg4[%c2, %c0_44] : memref<8x256xf32, #tpu.memory_space<vmem>>, vector<1x256xf32>
    %72 = vector.broadcast %71 : vector<1x256xf32> to vector<16x256xf32>
    %73 = arith.mulf %70, %72 : vector<16x256xf32>
    %74 = arith.truncf %73 : vector<16x256xf32> to vector<16x256xbf16>
    %cst_45 = arith.constant dense<0.000000e+00> : vector<16x256xf32>
    %75 = tpu.matmul %69, %74, %cst_45 {dimension_numbers = #tpu.dot_dimension_numbers<[1], [0], [0], [1], [0, 0, 1, 1], [], []>} : vector<16x16xbf16>, vector<16x256xbf16>, vector<16x256xf32> -> vector<16x256xf32>
    %c48_46 = arith.constant 48 : index
    %c16_47 = arith.constant 16 : index
    %76 = vector.load %arg2[%c48_46, %c16_47] : memref<96x128xbf16, #tpu.memory_space<vmem>>, vector<16x16xbf16>
    %c2_i32_48 = arith.constant 2 : i32
    %77 = tpu.dynamic_rotate %67 by %c2_i32_48 dim 1 : vector<16x256xf32>, i32 -> vector<16x256xf32>
    %c1_49 = arith.constant 1 : index
    %c0_50 = arith.constant 0 : index
    %78 = vector.load %arg4[%c1_49, %c0_50] : memref<8x256xf32, #tpu.memory_space<vmem>>, vector<1x256xf32>
    %79 = vector.broadcast %78 : vector<1x256xf32> to vector<16x256xf32>
    %80 = arith.mulf %77, %79 : vector<16x256xf32>
    %81 = arith.truncf %80 : vector<16x256xf32> to vector<16x256xbf16>
    %cst_51 = arith.constant dense<0.000000e+00> : vector<16x256xf32>
    %82 = tpu.matmul %76, %81, %cst_51 {dimension_numbers = #tpu.dot_dimension_numbers<[1], [0], [0], [1], [0, 0, 1, 1], [], []>} : vector<16x16xbf16>, vector<16x256xbf16>, vector<16x256xf32> -> vector<16x256xf32>
    %83 = arith.addf %75, %82 : vector<16x256xf32>
    %c48_52 = arith.constant 48 : index
    %c32_53 = arith.constant 32 : index
    %84 = vector.load %arg2[%c48_52, %c32_53] : memref<96x128xbf16, #tpu.memory_space<vmem>>, vector<16x16xbf16>
    %85 = arith.truncf %67 : vector<16x256xf32> to vector<16x256xbf16>
    %cst_54 = arith.constant dense<0.000000e+00> : vector<16x256xf32>
    %86 = tpu.matmul %84, %85, %cst_54 {dimension_numbers = #tpu.dot_dimension_numbers<[1], [0], [0], [1], [0, 0, 1, 1], [], []>} : vector<16x16xbf16>, vector<16x256xbf16>, vector<16x256xf32> -> vector<16x256xf32>
    %87 = arith.addf %83, %86 : vector<16x256xf32>
    %88 = vector.broadcast %68 : vector<16x1xf32> to vector<16x256xf32>
    %89 = arith.addf %87, %88 : vector<16x256xf32>
    %cst_55 = arith.constant 0.000000e+00 : f32
    %90 = vector.broadcast %cst_55 : f32 to vector<16x256xf32>
    %91 = arith.cmpf oge, %89, %90 : vector<16x256xf32>
    %cst_56 = arith.constant 0.00999999977 : f32
    %92 = vector.broadcast %cst_56 : f32 to vector<16x256xf32>
    %93 = arith.mulf %92, %89 : vector<16x256xf32>
    %94 = arith.select %91, %89, %93 : vector<16x256xi1>, vector<16x256xf32>
    %c64 = arith.constant 64 : index
    %c0_57 = arith.constant 0 : index
    %95 = vector.load %arg3[%c64, %c0_57] : memref<96x1xf32, #tpu.memory_space<vmem>>, vector<16x1xf32>
    %c64_58 = arith.constant 64 : index
    %c0_59 = arith.constant 0 : index
    %96 = vector.load %arg2[%c64_58, %c0_59] : memref<96x128xbf16, #tpu.memory_space<vmem>>, vector<16x16xbf16>
    %c4_i32_60 = arith.constant 4 : i32
    %97 = tpu.dynamic_rotate %94 by %c4_i32_60 dim 1 : vector<16x256xf32>, i32 -> vector<16x256xf32>
    %c2_61 = arith.constant 2 : index
    %c0_62 = arith.constant 0 : index
    %98 = vector.load %arg4[%c2_61, %c0_62] : memref<8x256xf32, #tpu.memory_space<vmem>>, vector<1x256xf32>
    %99 = vector.broadcast %98 : vector<1x256xf32> to vector<16x256xf32>
    %100 = arith.mulf %97, %99 : vector<16x256xf32>
    %101 = arith.truncf %100 : vector<16x256xf32> to vector<16x256xbf16>
    %cst_63 = arith.constant dense<0.000000e+00> : vector<16x256xf32>
    %102 = tpu.matmul %96, %101, %cst_63 {dimension_numbers = #tpu.dot_dimension_numbers<[1], [0], [0], [1], [0, 0, 1, 1], [], []>} : vector<16x16xbf16>, vector<16x256xbf16>, vector<16x256xf32> -> vector<16x256xf32>
    %c64_64 = arith.constant 64 : index
    %c16_65 = arith.constant 16 : index
    %103 = vector.load %arg2[%c64_64, %c16_65] : memref<96x128xbf16, #tpu.memory_space<vmem>>, vector<16x16xbf16>
    %c2_i32_66 = arith.constant 2 : i32
    %104 = tpu.dynamic_rotate %94 by %c2_i32_66 dim 1 : vector<16x256xf32>, i32 -> vector<16x256xf32>
    %c1_67 = arith.constant 1 : index
    %c0_68 = arith.constant 0 : index
    %105 = vector.load %arg4[%c1_67, %c0_68] : memref<8x256xf32, #tpu.memory_space<vmem>>, vector<1x256xf32>
    %106 = vector.broadcast %105 : vector<1x256xf32> to vector<16x256xf32>
    %107 = arith.mulf %104, %106 : vector<16x256xf32>
    %108 = arith.truncf %107 : vector<16x256xf32> to vector<16x256xbf16>
    %cst_69 = arith.constant dense<0.000000e+00> : vector<16x256xf32>
    %109 = tpu.matmul %103, %108, %cst_69 {dimension_numbers = #tpu.dot_dimension_numbers<[1], [0], [0], [1], [0, 0, 1, 1], [], []>} : vector<16x16xbf16>, vector<16x256xbf16>, vector<16x256xf32> -> vector<16x256xf32>
    %110 = arith.addf %102, %109 : vector<16x256xf32>
    %c64_70 = arith.constant 64 : index
    %c32_71 = arith.constant 32 : index
    %111 = vector.load %arg2[%c64_70, %c32_71] : memref<96x128xbf16, #tpu.memory_space<vmem>>, vector<16x16xbf16>
    %112 = arith.truncf %94 : vector<16x256xf32> to vector<16x256xbf16>
    %cst_72 = arith.constant dense<0.000000e+00> : vector<16x256xf32>
    %113 = tpu.matmul %111, %112, %cst_72 {dimension_numbers = #tpu.dot_dimension_numbers<[1], [0], [0], [1], [0, 0, 1, 1], [], []>} : vector<16x16xbf16>, vector<16x256xbf16>, vector<16x256xf32> -> vector<16x256xf32>
    %114 = arith.addf %110, %113 : vector<16x256xf32>
    %115 = vector.broadcast %95 : vector<16x1xf32> to vector<16x256xf32>
    %116 = arith.addf %114, %115 : vector<16x256xf32>
    %cst_73 = arith.constant 0.000000e+00 : f32
    %117 = vector.broadcast %cst_73 : f32 to vector<16x256xf32>
    %118 = arith.cmpf oge, %116, %117 : vector<16x256xf32>
    %cst_74 = arith.constant 0.00999999977 : f32
    %119 = vector.broadcast %cst_74 : f32 to vector<16x256xf32>
    %120 = arith.mulf %119, %116 : vector<16x256xf32>
    %121 = arith.select %118, %116, %120 : vector<16x256xi1>, vector<16x256xf32>
    %c80 = arith.constant 80 : index
    %c0_75 = arith.constant 0 : index
    %122 = vector.load %arg2[%c80, %c0_75] : memref<96x128xbf16, #tpu.memory_space<vmem>>, vector<16x16xbf16>
    %c80_76 = arith.constant 80 : index
    %c0_77 = arith.constant 0 : index
    %123 = vector.load %arg3[%c80_76, %c0_77] : memref<96x1xf32, #tpu.memory_space<vmem>>, vector<16x1xf32>
    %124 = arith.truncf %67 : vector<16x256xf32> to vector<16x256xbf16>
    %cst_78 = arith.constant dense<0.000000e+00> : vector<16x256xf32>
    %125 = tpu.matmul %122, %124, %cst_78 {dimension_numbers = #tpu.dot_dimension_numbers<[1], [0], [0], [1], [0, 0, 1, 1], [], []>} : vector<16x16xbf16>, vector<16x256xbf16>, vector<16x256xf32> -> vector<16x256xf32>
    %126 = vector.broadcast %123 : vector<16x1xf32> to vector<16x256xf32>
    %127 = arith.addf %125, %126 : vector<16x256xf32>
    %128 = arith.addf %121, %127 : vector<16x256xf32>
    %cst_79 = arith.constant 0.000000e+00 : f32
    %129 = vector.broadcast %cst_79 : f32 to vector<16x256xf32>
    %130 = arith.cmpf oge, %128, %129 : vector<16x256xf32>
    %cst_80 = arith.constant 0.00999999977 : f32
    %131 = vector.broadcast %cst_80 : f32 to vector<16x256xf32>
    %132 = arith.mulf %131, %128 : vector<16x256xf32>
    %133 = arith.select %130, %128, %132 : vector<16x256xi1>, vector<16x256xf32>
    %c0_81 = arith.constant 0 : index
    %c0_82 = arith.constant 0 : index
    %c0_83 = arith.constant 0 : index
    %134 = vector.load %arg5[%c0_81, %c0_82, %c0_83] : memref<1x16x256xf32, #tpu.memory_space<vmem>>, vector<1x16x256xf32>
    %135 = vector.shape_cast %134 : vector<1x16x256xf32> to vector<16x256xf32>
    %136 = vector.shape_cast %133 : vector<16x256xf32> to vector<1x16x256xf32>
    tpu.vector_store %arg5[%c0_81, %c0_82, %c0_83], %136 {strides = array<i32>} : memref<1x16x256xf32, #tpu.memory_space<vmem>>, vector<1x16x256xf32>,
    return
  }
  func.func @transform_0(%arg0: i32) -> (i32, i32, i32) {
    %c0_i32 = arith.constant 0 : i32
    %c0_i32_0 = arith.constant 0 : i32
    %c0_i32_1 = arith.constant 0 : i32
    return %arg0, %c0_i32, %c0_i32_0 : i32, i32, i32
  }
  func.func @transform_1(%arg0: i32) -> (i32, i32) {
    %c0_i32 = arith.constant 0 : i32
    %c0_i32_0 = arith.constant 0 : i32
    %c0_i32_1 = arith.constant 0 : i32
    return %c0_i32, %c0_i32_0 : i32, i32
  }
  func.func @transform_2(%arg0: i32) -> (i32, i32) {
    %c0_i32 = arith.constant 0 : i32
    %c0_i32_0 = arith.constant 0 : i32
    %c0_i32_1 = arith.constant 0 : i32
    return %c0_i32, %c0_i32_0 : i32, i32
  }
  func.func @transform_3(%arg0: i32) -> (i32, i32) {
    %c0_i32 = arith.constant 0 : i32
    %c0_i32_0 = arith.constant 0 : i32
    %c0_i32_1 = arith.constant 0 : i32
    return %c0_i32, %c0_i32_0 : i32, i32
  }
  func.func @transform_4(%arg0: i32) -> (i32, i32, i32) {
    %c0_i32 = arith.constant 0 : i32
    %c0_i32_0 = arith.constant 0 : i32
    %c0_i32_1 = arith.constant 0 : i32
    return %arg0, %c0_i32, %c0_i32_0 : i32, i32, i32
  }
}

</mosaic_0001>

<llo_original>
// kernel: tpu_custom_call.1
$region0: #{tpu_custom_call.1}
  #allocation0 [shape = 'u32[]', space=smem, size = 0x4, offset = 0x4, fixed_abs, tag = 'smem constant byte address 0x4 - core index']
  #allocation1 [shape = 'u32[144,128]{1,0:T(1,128)}', space=vmem, size = 0x12000, scoped, tag = 'internal scratch']
  %s0 = inlined_call_operand.vmem [shape: f32[2,16,256], index: 0, kind: input, shape index: {}]
  %s1 = inlined_call_operand.hbm [shape: bf16[96,128], index: 1, kind: input, shape index: {}]
  %s2 = inlined_call_operand.vmem [shape: f32[96,1], index: 2, kind: input, shape index: {}]
  %s3 = inlined_call_operand.vmem [shape: f32[8,256], index: 3, kind: input, shape index: {}]
  %s4 = inlined_call_operand.hbm [shape: f32[2,16,256], index: 4, kind: output, shape index: {}]
  %s5 = sld [smem:[#allocation0]]
  $region53: #{tpu_custom_call.1} parent=0
    _
  %s7 = ssub.s32 1, %s5
  %s8 = scalar_select 0, %s7, %s5
  $region1: #{tpu_custom_call.1} parent=0
    #allocation2 [shape = 'u8[24576]{0}', space=vmem, size = 0x6000, scoped, tag = 'input window, operand 1, single buffered']
    #allocation3 [shape = 's32[2]{0}', space=sflag, size = 0x8, scoped, tag = 'scoped memory for tpu_custom_call.1']
    #allocation4 [shape = 's32[2]{0}', space=sflag, size = 0x8, scoped, tag = 'scoped memory for tpu_custom_call.1']
    #allocation5 [shape = 'u8[32768]{0}', space=vmem, size = 0x8000, scoped, tag = 'output window, operand 0']
    %9 = vsyncpa [#allocation3], 0
    %10 = vsyncpa [#allocation4], 0
    %s11 = scalar_lea.sflag [#allocation4], 1
    %12 = vsyncpa %s11, 0
    loop: start=0, step=1, limit=4
    $region2: #{tpu_custom_call.1} parent=1 // loop_pre_header
      _
    $region3: #{tpu_custom_call.1} parent=1 // loop_header
      %s14 = sphi 0, %s18
      %p15 = scmp.ge.s32.totalorder %s14, 4
      %s24 = sphi 0, %s26
      %s27 = sphi 0, %s24
      %s28 = sphi 0, %s27
      %s44 = sphi 0, %s28
      %s48 = sphi 0, %s48
      %s50 = sphi 0, %s48
      %s51 = sphi 0, %s50
      %s65 = sphi 0, %s51
      %s69 = sphi 0, %s69
      %s71 = sphi 0, %s69
      %s72 = sphi 0, %s71
      %s86 = sphi 0, %s72
      %s90 = sphi 0, %s90
      %s92 = sphi 0, %s90
      %s93 = sphi 0, %s92
      %s107 = sphi 0, %s93
      %s113 = sphi 0, %s115
      %s116 = sphi 0, %s113
      %s117 = sphi 0, %s116
      %s133 = sphi 0, %s117
    $region4: #{tpu_custom_call.1} parent=1 // loop_header_branch
      %17 = sbr.rel (%p15) target = $region8
    $region5: #{tpu_custom_call.1} parent=1 // loop_body
      %s19 = ssub.s32 %s14, 1
      %s20 = ssub.s32 %s14, 2
      %s21 = sadd.s32 %s14, 1
      %s22 = ssub.s32 %s14, %s21
      %p23 = scmp.eq.s32.totalorder %s22, 0
      %s25 = sadd.s32 %s24, 1
      %s26 = scalar_select %p23, %s24, %s25
      %p29 = pneg %p23
      %p30 = scmp.eq.s32.totalorder %s14, 1
      %p31 = por %p29, %p30
      %p32 = scmp.ne.s32.totalorder %s24, %s27
      %p33 = scmp.eq.s32.totalorder %s14, 0
      %p34 = por %p32, %p33
      %p35 = scmp.ne.s32.totalorder %s24, %s27
      %p36 = scmp.eq.s32.totalorder %s19, 1
      %p37 = por %p35, %p36
      %p38 = scmp.ne.s32.totalorder %s27, %s28
      %p39 = scmp.eq.s32.totalorder %s19, 0
      %p40 = por %p38, %p39
      %p41 = scmp.ne.s32.totalorder %s27, %s28
      %p42 = scmp.eq.s32.totalorder %s20, 1
      %p43 = por %p41, %p42
      %p45 = scmp.ne.s32.totalorder %s28, %s44
      %p46 = scmp.eq.s32.totalorder %s20, 0
      %p47 = por %p45, %p46
      %s49 = sadd.s32 %s48, 1
      %p52 = scmp.eq.s32.totalorder %s14, 1
      %p53 = scmp.ne.s32.totalorder %s48, %s50
      %p54 = scmp.eq.s32.totalorder %s14, 0
      %p55 = por %p53, %p54
      %p56 = scmp.ne.s32.totalorder %s48, %s50
      %p57 = scmp.eq.s32.totalorder %s19, 1
      %p58 = por %p56, %p57
      %p59 = scmp.ne.s32.totalorder %s50, %s51
      %p60 = scmp.eq.s32.totalorder %s19, 0
      %p61 = por %p59, %p60
      %p62 = scmp.ne.s32.totalorder %s50, %s51
      %p63 = scmp.eq.s32.totalorder %s20, 1
      %p64 = por %p62, %p63
      %p66 = scmp.ne.s32.totalorder %s51, %s65
      %p67 = scmp.eq.s32.totalorder %s20, 0
      %p68 = por %p66, %p67
      %s70 = sadd.s32 %s69, 1
      %p73 = scmp.eq.s32.totalorder %s14, 1
      %p74 = scmp.ne.s32.totalorder %s69, %s71
      %p75 = scmp.eq.s32.totalorder %s14, 0
      %p76 = por %p74, %p75
      %p77 = scmp.ne.s32.totalorder %s69, %s71
      %p78 = scmp.eq.s32.totalorder %s19, 1
      %p79 = por %p77, %p78
      %p80 = scmp.ne.s32.totalorder %s71, %s72
      %p81 = scmp.eq.s32.totalorder %s19, 0
      %p82 = por %p80, %p81
      %p83 = scmp.ne.s32.totalorder %s71, %s72
      %p84 = scmp.eq.s32.totalorder %s20, 1
      %p85 = por %p83, %p84
      %p87 = scmp.ne.s32.totalorder %s72, %s86
      %p88 = scmp.eq.s32.totalorder %s20, 0
      %p89 = por %p87, %p88
      %s91 = sadd.s32 %s90, 1
      %p94 = scmp.eq.s32.totalorder %s14, 1
      %p95 = scmp.ne.s32.totalorder %s90, %s92
      %p96 = scmp.eq.s32.totalorder %s14, 0
      %p97 = por %p95, %p96
      %p98 = scmp.ne.s32.totalorder %s90, %s92
      %p99 = scmp.eq.s32.totalorder %s19, 1
      %p100 = por %p98, %p99
      %p101 = scmp.ne.s32.totalorder %s92, %s93
      %p102 = scmp.eq.s32.totalorder %s19, 0
      %p103 = por %p101, %p102
      %p104 = scmp.ne.s32.totalorder %s92, %s93
      %p105 = scmp.eq.s32.totalorder %s20, 1
      %p106 = por %p104, %p105
      %p108 = scmp.ne.s32.totalorder %s93, %s107
      %p109 = scmp.eq.s32.totalorder %s20, 0
      %p110 = por %p108, %p109
      %s111 = ssub.s32 %s14, %s21
      %p112 = scmp.eq.s32.totalorder %s111, 0
      %s114 = sadd.s32 %s113, 1
      %s115 = scalar_select %p112, %s113, %s114
      %p118 = pneg %p112
      %p119 = scmp.eq.s32.totalorder %s14, 1
      %p120 = por %p118, %p119
      %p121 = scmp.ne.s32.totalorder %s113, %s116
      %p122 = scmp.eq.s32.totalorder %s14, 0
      %p123 = por %p121, %p122
      %p124 = scmp.ne.s32.totalorder %s113, %s116
      %p125 = scmp.eq.s32.totalorder %s19, 1
      %p126 = por %p124, %p125
      %p127 = scmp.ne.s32.totalorder %s116, %s117
      %p128 = scmp.eq.s32.totalorder %s19, 0
      %p129 = por %p127, %p128
      %p130 = scmp.ne.s32.totalorder %s116, %s117
      %p131 = scmp.eq.s32.totalorder %s20, 1
      %p132 = por %p130, %p131
      %p134 = scmp.ne.s32.totalorder %s117, %s133
      %p135 = scmp.eq.s32.totalorder %s20, 0
      %p136 = por %p134, %p135
      %p137 = scmp.le.s32.totalorder 1, %s14
      %p138 = scmp.lt.s32.totalorder %s14, 3
      %p139 = pnand %p137, %p138
      %p140 = pneg %p139
      // Predicated region
      $region9: #{tpu_custom_call.1} parent=5 // pred_check
        _
      $region10: #{tpu_custom_call.1} parent=5 // pred_check_branch
        %142 = sbr.rel (%p139) target = $region12
      $region11: #{tpu_custom_call.1} parent=5 // pred_region
        %s143 = ssub.s32 %s14, 1
        // Predicated region
        $region13: #{tpu_custom_call.1} parent=11 // pred_check
          %p144 = pneg %p61
        $region14: #{tpu_custom_call.1} parent=11 // pred_check_branch
          %146 = sbr.rel (%p144) target = $region16
        $region15: #{tpu_custom_call.1} parent=11 // pred_region
          %s148 = ssub.s32 768, 768
          %149 = vsyncadd [#allocation3], %s148
          %s150 = sshll.u32 [#allocation2], 4
          %s151 = int_to_ptr.vmem [resolvable:$true] %s150
          %156 = dma.hbm_to_vmem [thread:$0]  %s1, 768, %s151, [#allocation3], 64, 64, 4
        $region16: #{tpu_custom_call.1} parent=11 // pred_fallthru
          _
        // Predicated region
        $region17: #{tpu_custom_call.1} parent=11 // pred_check
          %p157 = pneg %p82
        $region18: #{tpu_custom_call.1} parent=11 // pred_check_branch
          %159 = sbr.rel (%p157) target = $region20
        $region19: #{tpu_custom_call.1} parent=11 // pred_region
          _
        $region20: #{tpu_custom_call.1} parent=11 // pred_fallthru
          _
        // Predicated region
        $region21: #{tpu_custom_call.1} parent=11 // pred_check
          %p160 = pneg %p103
        $region22: #{tpu_custom_call.1} parent=11 // pred_check_branch
          %162 = sbr.rel (%p160) target = $region24
        $region23: #{tpu_custom_call.1} parent=11 // pred_region
          _
        $region24: #{tpu_custom_call.1} parent=11 // pred_fallthru
          _
      $region12: #{tpu_custom_call.1} parent=5 // pred_fallthru
        _
      %p163 = scmp.lt.s32.totalorder %s14, 2
      // Predicated region
      $region25: #{tpu_custom_call.1} parent=5 // pred_check
        %p164 = pneg %p163
      $region26: #{tpu_custom_call.1} parent=5 // pred_check_branch
        %166 = sbr.rel (%p164) target = $region28
      $region27: #{tpu_custom_call.1} parent=5 // pred_region
        // Predicated region
        $region29: #{tpu_custom_call.1} parent=27 // pred_check
          %p167 = pneg %p34
        $region30: #{tpu_custom_call.1} parent=27 // pred_check_branch
          %169 = sbr.rel (%p167) target = $region32
        $region31: #{tpu_custom_call.1} parent=27 // pred_region
          %p170 = scmp.lt.s32.totalorder %s14, 1
          %s171 = scalar_select %p170, %s14, 1
          %s172 = smul.addr %s171, 4
          %s173 = smul.addr %s172, 8
          %s174 = scalar_lea.vmem %s0, %s173
        $region32: #{tpu_custom_call.1} parent=27 // pred_fallthru
          _
      $region28: #{tpu_custom_call.1} parent=5 // pred_fallthru
        _
      %p175 = scmp.le.s32.totalorder 1, %s14
      %p176 = scmp.lt.s32.totalorder %s14, 3
      %p177 = pnand %p175, %p176
      %p178 = pneg %p177
      // Predicated region
      $region33: #{tpu_custom_call.1} parent=5 // pred_check
        _
      $region34: #{tpu_custom_call.1} parent=5 // pred_check_branch
        %180 = sbr.rel (%p177) target = $region36
      $region35: #{tpu_custom_call.1} parent=5 // pred_region
        %s181 = ssub.s32 %s14, 1
        // Predicated region
        $region37: #{tpu_custom_call.1} parent=35 // pred_check
          %p182 = pneg %p61
        $region38: #{tpu_custom_call.1} parent=35 // pred_check_branch
          %184 = sbr.rel (%p182) target = $region40
        $region39: #{tpu_custom_call.1} parent=35 // pred_region
          %185 = dma.done [#allocation3], 768
        $region40: #{tpu_custom_call.1} parent=35 // pred_fallthru
          _
        %p186 = scmp.lt.s32.totalorder %s19, 1
        %s187 = scalar_select %p186, %s19, 1
        %s188 = smul.addr %s187, 4
        %s189 = smul.addr %s188, 8
        %s190 = scalar_lea.vmem %s0, %s189
        %p191 = pneg %p40
        %p192 = pneg %p37
        %p193 = pneg %p61
        %p194 = pneg %p58
        %p195 = pneg %p82
        %p196 = pneg %p79
        %p197 = pneg %p103
        %p198 = pneg %p100
        %p199 = pneg %p129
        %p200 = pneg %p126
        %s201 = sand.u32 %s116, 1
        %s202 = scalar_lea.sflag [#allocation4], %s201
        %s203 = sand.u32 %s116, 1
        %s204 = smul.addr %s203, 32
        %s205 = scalar_lea.vmem [#allocation5], %s204
        %p206 = scmp.lt.s32.totalorder %s19, 1
        %s207 = scalar_select %p206, %s19, 1
        %s208 = smul.addr %s207, 4
        %s209 = smul.addr %s208, 8
        %s210 = scalar_lea.vmem %s0, %s209
        %v212 = vld [vmem:[%s210] sm:$0xff]
        %v213 = vld [vmem:[%s210 + $0x8] sm:$0xff]
        %v214 = vld [vmem:[%s210 + $0x10] sm:$0xff]
        %v215 = vld [vmem:[%s210 + $0x18] sm:$0xff]
        %v216 = vld [vmem:[%s2] sm:$0xff]
        %v217 = vld [vmem:[%s2 + $0x8] sm:$0xff]
        %v218 = vld [vmem:[#allocation2] sm:$0xf]
        %v219 = vld [vmem:[#allocation2 + $0x4] sm:$0xf]
        %220 = vrot.lane.b32.xlu0 %v212, 2
        %v221 = vpop.permute.xlu0 %220
        %222 = vrot.lane.b32.xlu0 %v214, 2
        %v223 = vpop.permute.xlu0 %222
        %224 = vrot.lane.b32.xlu0 %v213, 2
        %v225 = vpop.permute.xlu0 %224
        %226 = vrot.lane.b32.xlu0 %v215, 2
        %v227 = vpop.permute.xlu0 %226
        %v228 = vlaneseq
        %v229 = vand.u32 %v228, 127
        %vm230 = vcmp.lt.s32.totalorder %v229, 2
        %v231 = vsel %vm230, %v221, %v225
        %v232 = vsel %vm230, %v223, %v227
        %v233 = vsel %vm230, %v225, %v221
        %v234 = vsel %vm230, %v227, %v223
        %s235 = scalar_lea.vmem %s3, 1
        %v236 = vld [vmem:[%s235] ss:$8 sm:$0x3]
        %v238 = vlaneseq
        %v239 = vshrl.u32 %v238, 7
        %v240 = vsub.s32 0, %v239
        %v241 = vrot.slane %v236, %v240
        %v242 = vlaneseq
        %v243 = vshrl.u32 %v242, 7
        %v244 = vsub.s32 1, %v243
        %v245 = vrot.slane %v236, %v244
        %v248 = vmul.f32 %v233, %v241
        %v249 = vmul.f32 %v231, %v245
        %v250 = vmul.f32 %v234, %v241
        %v251 = vmul.f32 %v232, %v245
        %v252 = vpack.c.bf16 %v250, %v248
        %v253 = vpack.c.bf16 %v251, %v249
        %254 = vrot.lane.b32.xlu0 %v212, 1
        %v255 = vpop.permute.xlu0 %254
        %256 = vrot.lane.b32.xlu0 %v214, 1
        %v257 = vpop.permute.xlu0 %256
        %258 = vrot.lane.b32.xlu0 %v213, 1
        %v259 = vpop.permute.xlu0 %258
        %260 = vrot.lane.b32.xlu0 %v215, 1
        %v261 = vpop.permute.xlu0 %260
        %vm262 = vcmp.lt.s32.totalorder %v229, 1
        %v263 = vsel %vm262, %v255, %v259
        %v264 = vsel %vm262, %v257, %v261
        %v265 = vsel %vm262, %v259, %v255
        %v266 = vsel %vm262, %v261, %v257
        %v267 = vld [vmem:[%s3] ss:$8 sm:$0x3]
        %v269 = vlaneseq
        %v270 = vshrl.u32 %v269, 7
        %v271 = vsub.s32 0, %v270
        %v272 = vrot.slane %v267, %v271
        %v273 = vlaneseq
        %v274 = vshrl.u32 %v273, 7
        %v275 = vsub.s32 1, %v274
        %v276 = vrot.slane %v267, %v275
        %v279 = vmul.f32 %v265, %v272
        %v280 = vmul.f32 %v263, %v276
        %v281 = vmul.f32 %v266, %v272
        %v282 = vmul.f32 %v264, %v276
        %v283 = vpack.c.bf16 %v281, %v279
        %v284 = vpack.c.bf16 %v282, %v280
        %v287 = vunpack.c.l.b16 %v218
        %v288 = vunpack.c.l.b16 %v219
        %v289 = vpack.c.b16 %v288, %v287
        %290 = vrot.lane.b32.xlu0 %v289, 112
        %v291 = vpop.permute.xlu0 %290
        %vm292 = vcmask 130048
        %v294 = vsel %vm292, %v291, 0
        %296 = vmatprep.subr.bf16.mxu0 %v284
        %297 = vmatpush1.bf16.msra.mxu0 %v283
        %298 = vmatprep.subr.bf16.mxu0 0
        %299 = vmatpush1.bf16.msra.mxu0 0
        %300 = vmatprep.subr.bf16.mxu0 0
        %301 = vmatpush1.bf16.msra.mxu0 0
        %302 = vmatprep.subr.bf16.mxu0 0
        %303 = vmatpush1.bf16.msra.mxu0 0
        %304 = vmatprep.subr.bf16.mxu0 0
        %305 = vmatpush1.bf16.msra.mxu0 0
        %306 = vmatprep.subr.bf16.mxu0 0
        %307 = vmatpush1.bf16.msra.mxu0 0
        %308 = vmatprep.subr.bf16.mxu0 0
        %309 = vmatpush1.bf16.msra.mxu0 0
        %310 = vmatprep.subr.bf16.mxu0 0
        %311 = vmatpush1.bf16.msra.mxu0 0
        %312 = vmatprep.subr.bf16.mxu0 0
        %313 = vmatpush1.bf16.msra.mxu0 0
        %314 = vmatprep.subr.bf16.mxu0 0
        %315 = vmatpush1.bf16.msra.mxu0 0
        %316 = vmatprep.subr.bf16.mxu0 0
        %317 = vmatpush1.bf16.msra.mxu0 0
        %318 = vmatprep.subr.bf16.mxu0 0
        %319 = vmatpush1.bf16.msra.mxu0 0
        %320 = vmatprep.subr.bf16.mxu0 0
        %321 = vmatpush1.bf16.msra.mxu0 0
        %322 = vmatprep.subr.bf16.mxu0 0
        %323 = vmatpush1.bf16.msra.mxu0 0
        %324 = vmatprep.subr.bf16.mxu0 0
        %325 = vmatpush1.bf16.msra.mxu0 0
        %326 = vmatprep.subr.bf16.mxu0 0
        %327 = vmatpush1.bf16.msra.mxu0 0
        %328 = vmatprep.mubr.bf16.mxu0 0
        %329 = vmatmul.mubr.bf16.gmra.mrb[0].mxu0 %v294
        %v330 = vpop.f32.mrb[0].mxu0
        %v331 = vadd.f32 0.0, %v330
        %v332 = vpop.f32.mrb[0].mxu0
        %v333 = vadd.f32 0.0, %v332
        %v334 = vpop.f32.mrb[0].mxu0
        %v335 = vadd.f32 0.0, %v334
        %v336 = vpop.f32.mrb[0].mxu0
        %v337 = vadd.f32 0.0, %v336
        %338 = vdwg.mxu0
        %v340 = vsel %vm292, %v289, 0
        %342 = vmatprep.subr.bf16.mxu0 %v253
        %343 = vmatpush1.bf16.msra.mxu0 %v252
        %344 = vmatprep.subr.bf16.mxu0 0
        %345 = vmatpush1.bf16.msra.mxu0 0
        %346 = vmatprep.subr.bf16.mxu0 0
        %347 = vmatpush1.bf16.msra.mxu0 0
        %348 = vmatprep.subr.bf16.mxu0 0
        %349 = vmatpush1.bf16.msra.mxu0 0
        %350 = vmatprep.subr.bf16.mxu0 0
        %351 = vmatpush1.bf16.msra.mxu0 0
        %352 = vmatprep.subr.bf16.mxu0 0
        %353 = vmatpush1.bf16.msra.mxu0 0
        %354 = vmatprep.subr.bf16.mxu0 0
        %355 = vmatpush1.bf16.msra.mxu0 0
        %356 = vmatprep.subr.bf16.mxu0 0
        %357 = vmatpush1.bf16.msra.mxu0 0
        %358 = vmatprep.subr.bf16.mxu0 0
        %359 = vmatpush1.bf16.msra.mxu0 0
        %360 = vmatprep.subr.bf16.mxu0 0
        %361 = vmatpush1.bf16.msra.mxu0 0
        %362 = vmatprep.subr.bf16.mxu0 0
        %363 = vmatpush1.bf16.msra.mxu0 0
        %364 = vmatprep.subr.bf16.mxu0 0
        %365 = vmatpush1.bf16.msra.mxu0 0
        %366 = vmatprep.subr.bf16.mxu0 0
        %367 = vmatpush1.bf16.msra.mxu0 0
        %368 = vmatprep.subr.bf16.mxu0 0
        %369 = vmatpush1.bf16.msra.mxu0 0
        %370 = vmatprep.subr.bf16.mxu0 0
        %371 = vmatpush1.bf16.msra.mxu0 0
        %372 = vmatprep.subr.bf16.mxu0 0
        %373 = vmatpush1.bf16.msra.mxu0 0
        %374 = vmatprep.mubr.bf16.mxu0 0
        %375 = vmatmul.mubr.bf16.gmra.mrb[0].mxu0 %v340
        %v376 = vpop.f32.mrb[0].mxu0
        %v377 = vadd.f32 %v331, %v376
        %v378 = vpop.f32.mrb[0].mxu0
        %v379 = vadd.f32 %v333, %v378
        %v380 = vpop.f32.mrb[0].mxu0
        %v381 = vadd.f32 %v335, %v380
        %v382 = vpop.f32.mrb[0].mxu0
        %v383 = vadd.f32 %v337, %v382
        %384 = vdwg.mxu0
        %v385 = vpack.c.bf16 %v214, %v212
        %v386 = vpack.c.bf16 %v215, %v213
        %387 = vrot.lane.b32.xlu0 %v289, 96
        %v388 = vpop.permute.xlu0 %387
        %v390 = vsel %vm292, %v388, 0
        %392 = vmatprep.subr.bf16.mxu0 %v386
        %393 = vmatpush1.bf16.msra.mxu0 %v385
        %394 = vmatprep.subr.bf16.mxu0 0
        %395 = vmatpush1.bf16.msra.mxu0 0
        %396 = vmatprep.subr.bf16.mxu0 0
        %397 = vmatpush1.bf16.msra.mxu0 0
        %398 = vmatprep.subr.bf16.mxu0 0
        %399 = vmatpush1.bf16.msra.mxu0 0
        %400 = vmatprep.subr.bf16.mxu0 0
        %401 = vmatpush1.bf16.msra.mxu0 0
        %402 = vmatprep.subr.bf16.mxu0 0
        %403 = vmatpush1.bf16.msra.mxu0 0
        %404 = vmatprep.subr.bf16.mxu0 0
        %405 = vmatpush1.bf16.msra.mxu0 0
        %406 = vmatprep.subr.bf16.mxu0 0
        %407 = vmatpush1.bf16.msra.mxu0 0
        %408 = vmatprep.subr.bf16.mxu0 0
        %409 = vmatpush1.bf16.msra.mxu0 0
        %410 = vmatprep.subr.bf16.mxu0 0
        %411 = vmatpush1.bf16.msra.mxu0 0
        %412 = vmatprep.subr.bf16.mxu0 0
        %413 = vmatpush1.bf16.msra.mxu0 0
        %414 = vmatprep.subr.bf16.mxu0 0
        %415 = vmatpush1.bf16.msra.mxu0 0
        %416 = vmatprep.subr.bf16.mxu0 0
        %417 = vmatpush1.bf16.msra.mxu0 0
        %418 = vmatprep.subr.bf16.mxu0 0
        %419 = vmatpush1.bf16.msra.mxu0 0
        %420 = vmatprep.subr.bf16.mxu0 0
        %421 = vmatpush1.bf16.msra.mxu0 0
        %422 = vmatprep.subr.bf16.mxu0 0
        %423 = vmatpush1.bf16.msra.mxu0 0
        %424 = vmatprep.mubr.bf16.mxu0 0
        %425 = vmatmul.mubr.bf16.gmra.mrb[0].mxu0 %v390
        %v426 = vpop.f32.mrb[0].mxu0
        %v427 = vadd.f32 0.0, %v426
        %v428 = vpop.f32.mrb[0].mxu0
        %v429 = vadd.f32 0.0, %v428
        %v430 = vpop.f32.mrb[0].mxu0
        %v431 = vadd.f32 0.0, %v430
        %v432 = vpop.f32.mrb[0].mxu0
        %v433 = vadd.f32 0.0, %v432
        %434 = vdwg.mxu0
        %v435 = vadd.f32 %v377, %v427
        %v436 = vadd.f32 %v379, %v429
        %v437 = vadd.f32 %v381, %v431
        %v438 = vadd.f32 %v383, %v433
        %440 = vset.pattern.permute.xlu0 0
        %441 = vperm.xlu0 %440, %v216
        %v442 = vpop.permute.xlu0 %441
        %445 = vset.pattern.permute.xlu0 0
        %446 = vperm.xlu0 %445, %v217
        %v447 = vpop.permute.xlu0 %446
        %v449 = vadd.f32 %v435, %v442
        %v450 = vadd.f32 %v436, %v442
        %v451 = vadd.f32 %v437, %v447
        %v452 = vadd.f32 %v438, %v447
        %vm453 = vcmp.ge.f32.partialorder %v449, 0.0
        %vm454 = vcmp.ge.f32.partialorder %v450, 0.0
        %vm455 = vcmp.ge.f32.partialorder %v451, 0.0
        %vm456 = vcmp.ge.f32.partialorder %v452, 0.0
        %v457 = vmul.f32 %v449, 0.01
        %v458 = vmul.f32 %v450, 0.01
        %v459 = vmul.f32 %v451, 0.01
        %v460 = vmul.f32 %v452, 0.01
        %v461 = vsel %vm453, %v449, %v457
        %v462 = vsel %vm454, %v450, %v458
        %v463 = vsel %vm455, %v451, %v459
        %v464 = vsel %vm456, %v452, %v460
        %v465 = vld [vmem:[%s2 + $0x10] sm:$0xff]
        %v466 = vld [vmem:[%s2 + $0x18] sm:$0xff]
        %v467 = vld [vmem:[#allocation2 + $0x8] sm:$0xf]
        %v468 = vld [vmem:[#allocation2 + $0xc] sm:$0xf]
        %469 = vrot.lane.b32.xlu0 %v461, 2
        %v470 = vpop.permute.xlu0 %469
        %471 = vrot.lane.b32.xlu0 %v463, 2
        %v472 = vpop.permute.xlu0 %471
        %473 = vrot.lane.b32.xlu0 %v462, 2
        %v474 = vpop.permute.xlu0 %473
        %475 = vrot.lane.b32.xlu0 %v464, 2
        %v476 = vpop.permute.xlu0 %475
        %v477 = vsel %vm230, %v470, %v474
        %v478 = vsel %vm230, %v472, %v476
        %v479 = vsel %vm230, %v474, %v470
        %v480 = vsel %vm230, %v476, %v472
        %v481 = vmul.f32 %v479, %v241
        %v482 = vmul.f32 %v477, %v245
        %v483 = vmul.f32 %v480, %v241
        %v484 = vmul.f32 %v478, %v245
        %v485 = vpack.c.bf16 %v483, %v481
        %v486 = vpack.c.bf16 %v484, %v482
        %487 = vrot.lane.b32.xlu0 %v461, 1
        %v488 = vpop.permute.xlu0 %487
        %489 = vrot.lane.b32.xlu0 %v463, 1
        %v490 = vpop.permute.xlu0 %489
        %491 = vrot.lane.b32.xlu0 %v462, 1
        %v492 = vpop.permute.xlu0 %491
        %493 = vrot.lane.b32.xlu0 %v464, 1
        %v494 = vpop.permute.xlu0 %493
        %v495 = vsel %vm262, %v488, %v492
        %v496 = vsel %vm262, %v490, %v494
        %v497 = vsel %vm262, %v492, %v488
        %v498 = vsel %vm262, %v494, %v490
        %v499 = vmul.f32 %v497, %v272
        %v500 = vmul.f32 %v495, %v276
        %v501 = vmul.f32 %v498, %v272
        %v502 = vmul.f32 %v496, %v276
        %v503 = vpack.c.bf16 %v501, %v499
        %v504 = vpack.c.bf16 %v502, %v500
        %v507 = vunpack.c.l.b16 %v467
        %v508 = vunpack.c.l.b16 %v468
        %v509 = vpack.c.b16 %v508, %v507
        %510 = vrot.lane.b32.xlu0 %v509, 112
        %v511 = vpop.permute.xlu0 %510
        %v513 = vsel %vm292, %v511, 0
        %515 = vmatprep.subr.bf16.mxu0 %v504
        %516 = vmatpush1.bf16.msra.mxu0 %v503
        %517 = vmatprep.subr.bf16.mxu0 0
        %518 = vmatpush1.bf16.msra.mxu0 0
        %519 = vmatprep.subr.bf16.mxu0 0
        %520 = vmatpush1.bf16.msra.mxu0 0
        %521 = vmatprep.subr.bf16.mxu0 0
        %522 = vmatpush1.bf16.msra.mxu0 0
        %523 = vmatprep.subr.bf16.mxu0 0
        %524 = vmatpush1.bf16.msra.mxu0 0
        %525 = vmatprep.subr.bf16.mxu0 0
        %526 = vmatpush1.bf16.msra.mxu0 0
        %527 = vmatprep.subr.bf16.mxu0 0
        %528 = vmatpush1.bf16.msra.mxu0 0
        %529 = vmatprep.subr.bf16.mxu0 0
        %530 = vmatpush1.bf16.msra.mxu0 0
        %531 = vmatprep.subr.bf16.mxu0 0
        %532 = vmatpush1.bf16.msra.mxu0 0
        %533 = vmatprep.subr.bf16.mxu0 0
        %534 = vmatpush1.bf16.msra.mxu0 0
        %535 = vmatprep.subr.bf16.mxu0 0
        %536 = vmatpush1.bf16.msra.mxu0 0
        %537 = vmatprep.subr.bf16.mxu0 0
        %538 = vmatpush1.bf16.msra.mxu0 0
        %539 = vmatprep.subr.bf16.mxu0 0
        %540 = vmatpush1.bf16.msra.mxu0 0
        %541 = vmatprep.subr.bf16.mxu0 0
        %542 = vmatpush1.bf16.msra.mxu0 0
        %543 = vmatprep.subr.bf16.mxu0 0
        %544 = vmatpush1.bf16.msra.mxu0 0
        %545 = vmatprep.subr.bf16.mxu0 0
        %546 = vmatpush1.bf16.msra.mxu0 0
        %547 = vmatprep.mubr.bf16.mxu0 0
        %548 = vmatmul.mubr.bf16.gmra.mrb[0].mxu0 %v513
        %v549 = vpop.f32.mrb[0].mxu0
        %v550 = vadd.f32 0.0, %v549
        %v551 = vpop.f32.mrb[0].mxu0
        %v552 = vadd.f32 0.0, %v551
        %v553 = vpop.f32.mrb[0].mxu0
        %v554 = vadd.f32 0.0, %v553
        %v555 = vpop.f32.mrb[0].mxu0
        %v556 = vadd.f32 0.0, %v555
        %557 = vdwg.mxu0
        %v559 = vsel %vm292, %v509, 0
        %561 = vmatprep.subr.bf16.mxu0 %v486
        %562 = vmatpush1.bf16.msra.mxu0 %v485
        %563 = vmatprep.subr.bf16.mxu0 0
        %564 = vmatpush1.bf16.msra.mxu0 0
        %565 = vmatprep.subr.bf16.mxu0 0
        %566 = vmatpush1.bf16.msra.mxu0 0
        %567 = vmatprep.subr.bf16.mxu0 0
        %568 = vmatpush1.bf16.msra.mxu0 0
        %569 = vmatprep.subr.bf16.mxu0 0
        %570 = vmatpush1.bf16.msra.mxu0 0
        %571 = vmatprep.subr.bf16.mxu0 0
        %572 = vmatpush1.bf16.msra.mxu0 0
        %573 = vmatprep.subr.bf16.mxu0 0
        %574 = vmatpush1.bf16.msra.mxu0 0
        %575 = vmatprep.subr.bf16.mxu0 0
        %576 = vmatpush1.bf16.msra.mxu0 0
        %577 = vmatprep.subr.bf16.mxu0 0
        %578 = vmatpush1.bf16.msra.mxu0 0
        %579 = vmatprep.subr.bf16.mxu0 0
        %580 = vmatpush1.bf16.msra.mxu0 0
        %581 = vmatprep.subr.bf16.mxu0 0
        %582 = vmatpush1.bf16.msra.mxu0 0
        %583 = vmatprep.subr.bf16.mxu0 0
        %584 = vmatpush1.bf16.msra.mxu0 0
        %585 = vmatprep.subr.bf16.mxu0 0
        %586 = vmatpush1.bf16.msra.mxu0 0
        %587 = vmatprep.subr.bf16.mxu0 0
        %588 = vmatpush1.bf16.msra.mxu0 0
        %589 = vmatprep.subr.bf16.mxu0 0
        %590 = vmatpush1.bf16.msra.mxu0 0
        %591 = vmatprep.subr.bf16.mxu0 0
        %592 = vmatpush1.bf16.msra.mxu0 0
        %593 = vmatprep.mubr.bf16.mxu0 0
        %594 = vmatmul.mubr.bf16.gmra.mrb[0].mxu0 %v559
        %v595 = vpop.f32.mrb[0].mxu0
        %v596 = vadd.f32 %v550, %v595
        %v597 = vpop.f32.mrb[0].mxu0
        %v598 = vadd.f32 %v552, %v597
        %v599 = vpop.f32.mrb[0].mxu0
        %v600 = vadd.f32 %v554, %v599
        %v601 = vpop.f32.mrb[0].mxu0
        %v602 = vadd.f32 %v556, %v601
        %603 = vdwg.mxu0
        %v604 = vpack.c.bf16 %v463, %v461
        %v605 = vpack.c.bf16 %v464, %v462
        %606 = vrot.lane.b32.xlu0 %v509, 96
        %v607 = vpop.permute.xlu0 %606
        %v609 = vsel %vm292, %v607, 0
        %611 = vmatprep.subr.bf16.mxu0 %v605
        %612 = vmatpush1.bf16.msra.mxu0 %v604
        %613 = vmatprep.subr.bf16.mxu0 0
        %614 = vmatpush1.bf16.msra.mxu0 0
        %615 = vmatprep.subr.bf16.mxu0 0
        %616 = vmatpush1.bf16.msra.mxu0 0
        %617 = vmatprep.subr.bf16.mxu0 0
        %618 = vmatpush1.bf16.msra.mxu0 0
        %619 = vmatprep.subr.bf16.mxu0 0
        %620 = vmatpush1.bf16.msra.mxu0 0
        %621 = vmatprep.subr.bf16.mxu0 0
        %622 = vmatpush1.bf16.msra.mxu0 0
        %623 = vmatprep.subr.bf16.mxu0 0
        %624 = vmatpush1.bf16.msra.mxu0 0
        %625 = vmatprep.subr.bf16.mxu0 0
        %626 = vmatpush1.bf16.msra.mxu0 0
        %627 = vmatprep.subr.bf16.mxu0 0
        %628 = vmatpush1.bf16.msra.mxu0 0
        %629 = vmatprep.subr.bf16.mxu0 0
        %630 = vmatpush1.bf16.msra.mxu0 0
        %631 = vmatprep.subr.bf16.mxu0 0
        %632 = vmatpush1.bf16.msra.mxu0 0
        %633 = vmatprep.subr.bf16.mxu0 0
        %634 = vmatpush1.bf16.msra.mxu0 0
        %635 = vmatprep.subr.bf16.mxu0 0
        %636 = vmatpush1.bf16.msra.mxu0 0
        %637 = vmatprep.subr.bf16.mxu0 0
        %638 = vmatpush1.bf16.msra.mxu0 0
        %639 = vmatprep.subr.bf16.mxu0 0
        %640 = vmatpush1.bf16.msra.mxu0 0
        %641 = vmatprep.subr.bf16.mxu0 0
        %642 = vmatpush1.bf16.msra.mxu0 0
        %643 = vmatprep.mubr.bf16.mxu0 0
        %644 = vmatmul.mubr.bf16.gmra.mrb[0].mxu0 %v609
        %v645 = vpop.f32.mrb[0].mxu0
        %v646 = vadd.f32 0.0, %v645
        %v647 = vpop.f32.mrb[0].mxu0
        %v648 = vadd.f32 0.0, %v647
        %v649 = vpop.f32.mrb[0].mxu0
        %v650 = vadd.f32 0.0, %v649
        %v651 = vpop.f32.mrb[0].mxu0
        %v652 = vadd.f32 0.0, %v651
        %653 = vdwg.mxu0
        %v654 = vadd.f32 %v596, %v646
        %v655 = vadd.f32 %v598, %v648
        %v656 = vadd.f32 %v600, %v650
        %v657 = vadd.f32 %v602, %v652
        %659 = vset.pattern.permute.xlu0 0
        %660 = vperm.xlu0 %659, %v465
        %v661 = vpop.permute.xlu0 %660
        %664 = vset.pattern.permute.xlu0 0
        %665 = vperm.xlu0 %664, %v466
        %v666 = vpop.permute.xlu0 %665
        %v668 = vadd.f32 %v654, %v661
        %v669 = vadd.f32 %v655, %v661
        %v670 = vadd.f32 %v656, %v666
        %v671 = vadd.f32 %v657, %v666
        %vm672 = vcmp.ge.f32.partialorder %v668, 0.0
        %vm673 = vcmp.ge.f32.partialorder %v669, 0.0
        %vm674 = vcmp.ge.f32.partialorder %v670, 0.0
        %vm675 = vcmp.ge.f32.partialorder %v671, 0.0
        %v676 = vmul.f32 %v668, 0.01
        %v677 = vmul.f32 %v669, 0.01
        %v678 = vmul.f32 %v670, 0.01
        %v679 = vmul.f32 %v671, 0.01
        %v680 = vsel %vm672, %v668, %v676
        %v681 = vsel %vm673, %v669, %v677
        %v682 = vsel %vm674, %v670, %v678
        %v683 = vsel %vm675, %v671, %v679
        %v684 = vld [vmem:[#allocation2 + $0x10] sm:$0xf]
        %v685 = vld [vmem:[#allocation2 + $0x14] sm:$0xf]
        %v686 = vld [vmem:[%s2 + $0x20] sm:$0xff]
        %v687 = vld [vmem:[%s2 + $0x28] sm:$0xff]
        %689 = vset.pattern.permute.xlu0 0
        %690 = vperm.xlu0 %689, %v686
        %v691 = vpop.permute.xlu0 %690
        %694 = vset.pattern.permute.xlu0 0
        %695 = vperm.xlu0 %694, %v687
        %v696 = vpop.permute.xlu0 %695
        %v700 = vunpack.c.l.b16 %v684
        %v701 = vunpack.c.l.b16 %v685
        %v702 = vpack.c.b16 %v701, %v700
        %v704 = vsel %vm292, %v702, 0
        %706 = vmatprep.subr.bf16.mxu0 %v386
        %707 = vmatpush1.bf16.msra.mxu0 %v385
        %708 = vmatprep.subr.bf16.mxu0 0
        %709 = vmatpush1.bf16.msra.mxu0 0
        %710 = vmatprep.subr.bf16.mxu0 0
        %711 = vmatpush1.bf16.msra.mxu0 0
        %712 = vmatprep.subr.bf16.mxu0 0
        %713 = vmatpush1.bf16.msra.mxu0 0
        %714 = vmatprep.subr.bf16.mxu0 0
        %715 = vmatpush1.bf16.msra.mxu0 0
        %716 = vmatprep.subr.bf16.mxu0 0
        %717 = vmatpush1.bf16.msra.mxu0 0
        %718 = vmatprep.subr.bf16.mxu0 0
        %719 = vmatpush1.bf16.msra.mxu0 0
        %720 = vmatprep.subr.bf16.mxu0 0
        %721 = vmatpush1.bf16.msra.mxu0 0
        %722 = vmatprep.subr.bf16.mxu0 0
        %723 = vmatpush1.bf16.msra.mxu0 0
        %724 = vmatprep.subr.bf16.mxu0 0
        %725 = vmatpush1.bf16.msra.mxu0 0
        %726 = vmatprep.subr.bf16.mxu0 0
        %727 = vmatpush1.bf16.msra.mxu0 0
        %728 = vmatprep.subr.bf16.mxu0 0
        %729 = vmatpush1.bf16.msra.mxu0 0
        %730 = vmatprep.subr.bf16.mxu0 0
        %731 = vmatpush1.bf16.msra.mxu0 0
        %732 = vmatprep.subr.bf16.mxu0 0
        %733 = vmatpush1.bf16.msra.mxu0 0
        %734 = vmatprep.subr.bf16.mxu0 0
        %735 = vmatpush1.bf16.msra.mxu0 0
        %736 = vmatprep.subr.bf16.mxu0 0
        %737 = vmatpush1.bf16.msra.mxu0 0
        %738 = vmatprep.mubr.bf16.mxu0 0
        %739 = vmatmul.mubr.bf16.gmra.mrb[0].mxu0 %v704
        %v740 = vpop.f32.mrb[0].mxu0
        %v741 = vadd.f32 %v691, %v740
        %v742 = vpop.f32.mrb[0].mxu0
        %v743 = vadd.f32 %v691, %v742
        %v744 = vpop.f32.mrb[0].mxu0
        %v745 = vadd.f32 %v696, %v744
        %v746 = vpop.f32.mrb[0].mxu0
        %v747 = vadd.f32 %v696, %v746
        %748 = vdwg.mxu0
        %v749 = vadd.f32 %v680, %v741
        %v750 = vadd.f32 %v681, %v743
        %v751 = vadd.f32 %v682, %v745
        %v752 = vadd.f32 %v683, %v747
        %vm753 = vcmp.ge.f32.partialorder %v749, 0.0
        %vm754 = vcmp.ge.f32.partialorder %v750, 0.0
        %vm755 = vcmp.ge.f32.partialorder %v751, 0.0
        %vm756 = vcmp.ge.f32.partialorder %v752, 0.0
        %v757 = vmul.f32 %v749, 0.01
        %v758 = vmul.f32 %v750, 0.01
        %v759 = vmul.f32 %v751, 0.01
        %v760 = vmul.f32 %v752, 0.01
        %v761 = vsel %vm753, %v749, %v757
        %v762 = vsel %vm754, %v750, %v758
        %v763 = vsel %vm755, %v751, %v759
        %v764 = vsel %vm756, %v752, %v760
        %v765 = vld [vmem:[%s2 + $0x30] sm:$0xff]
        %v766 = vld [vmem:[%s2 + $0x38] sm:$0xff]
        %v767 = vld [vmem:[#allocation2 + $0x18] sm:$0xf]
        %v768 = vld [vmem:[#allocation2 + $0x1c] sm:$0xf]
        %769 = vrot.lane.b32.xlu0 %v761, 4
        %v770 = vpop.permute.xlu0 %769
        %771 = vrot.lane.b32.xlu0 %v763, 4
        %v772 = vpop.permute.xlu0 %771
        %773 = vrot.lane.b32.xlu0 %v762, 4
        %v774 = vpop.permute.xlu0 %773
        %775 = vrot.lane.b32.xlu0 %v764, 4
        %v776 = vpop.permute.xlu0 %775
        %vm777 = vcmp.lt.s32.totalorder %v229, 4
        %v778 = vsel %vm777, %v770, %v774
        %v779 = vsel %vm777, %v772, %v776
        %v780 = vsel %vm777, %v774, %v770
        %v781 = vsel %vm777, %v776, %v772
        %s782 = scalar_lea.vmem %s3, 2
        %v783 = vld [vmem:[%s782] ss:$8 sm:$0x3]
        %v785 = vlaneseq
        %v786 = vshrl.u32 %v785, 7
        %v787 = vsub.s32 0, %v786
        %v788 = vrot.slane %v783, %v787
        %v789 = vlaneseq
        %v790 = vshrl.u32 %v789, 7
        %v791 = vsub.s32 1, %v790
        %v792 = vrot.slane %v783, %v791
        %v795 = vmul.f32 %v780, %v788
        %v796 = vmul.f32 %v778, %v792
        %v797 = vmul.f32 %v781, %v788
        %v798 = vmul.f32 %v779, %v792
        %v799 = vpack.c.bf16 %v797, %v795
        %v800 = vpack.c.bf16 %v798, %v796
        %801 = vrot.lane.b32.xlu0 %v761, 2
        %v802 = vpop.permute.xlu0 %801
        %803 = vrot.lane.b32.xlu0 %v763, 2
        %v804 = vpop.permute.xlu0 %803
        %805 = vrot.lane.b32.xlu0 %v762, 2
        %v806 = vpop.permute.xlu0 %805
        %807 = vrot.lane.b32.xlu0 %v764, 2
        %v808 = vpop.permute.xlu0 %807
        %v809 = vsel %vm230, %v802, %v806
        %v810 = vsel %vm230, %v804, %v808
        %v811 = vsel %vm230, %v806, %v802
        %v812 = vsel %vm230, %v808, %v804
        %v813 = vmul.f32 %v811, %v241
        %v814 = vmul.f32 %v809, %v245
        %v815 = vmul.f32 %v812, %v241
        %v816 = vmul.f32 %v810, %v245
        %v817 = vpack.c.bf16 %v815, %v813
        %v818 = vpack.c.bf16 %v816, %v814
        %v821 = vunpack.c.l.b16 %v767
        %v822 = vunpack.c.l.b16 %v768
        %v823 = vpack.c.b16 %v822, %v821
        %824 = vrot.lane.b32.xlu0 %v823, 112
        %v825 = vpop.permute.xlu0 %824
        %v827 = vsel %vm292, %v825, 0
        %829 = vmatprep.subr.bf16.mxu0 %v818
        %830 = vmatpush1.bf16.msra.mxu0 %v817
        %831 = vmatprep.subr.bf16.mxu0 0
        %832 = vmatpush1.bf16.msra.mxu0 0
        %833 = vmatprep.subr.bf16.mxu0 0
        %834 = vmatpush1.bf16.msra.mxu0 0
        %835 = vmatprep.subr.bf16.mxu0 0
        %836 = vmatpush1.bf16.msra.mxu0 0
        %837 = vmatprep.subr.bf16.mxu0 0
        %838 = vmatpush1.bf16.msra.mxu0 0
        %839 = vmatprep.subr.bf16.mxu0 0
        %840 = vmatpush1.bf16.msra.mxu0 0
        %841 = vmatprep.subr.bf16.mxu0 0
        %842 = vmatpush1.bf16.msra.mxu0 0
        %843 = vmatprep.subr.bf16.mxu0 0
        %844 = vmatpush1.bf16.msra.mxu0 0
        %845 = vmatprep.subr.bf16.mxu0 0
        %846 = vmatpush1.bf16.msra.mxu0 0
        %847 = vmatprep.subr.bf16.mxu0 0
        %848 = vmatpush1.bf16.msra.mxu0 0
        %849 = vmatprep.subr.bf16.mxu0 0
        %850 = vmatpush1.bf16.msra.mxu0 0
        %851 = vmatprep.subr.bf16.mxu0 0
        %852 = vmatpush1.bf16.msra.mxu0 0
        %853 = vmatprep.subr.bf16.mxu0 0
        %854 = vmatpush1.bf16.msra.mxu0 0
        %855 = vmatprep.subr.bf16.mxu0 0
        %856 = vmatpush1.bf16.msra.mxu0 0
        %857 = vmatprep.subr.bf16.mxu0 0
        %858 = vmatpush1.bf16.msra.mxu0 0
        %859 = vmatprep.subr.bf16.mxu0 0
        %860 = vmatpush1.bf16.msra.mxu0 0
        %861 = vmatprep.mubr.bf16.mxu0 0
        %862 = vmatmul.mubr.bf16.gmra.mrb[0].mxu0 %v827
        %v863 = vpop.f32.mrb[0].mxu0
        %v864 = vadd.f32 0.0, %v863
        %v865 = vpop.f32.mrb[0].mxu0
        %v866 = vadd.f32 0.0, %v865
        %v867 = vpop.f32.mrb[0].mxu0
        %v868 = vadd.f32 0.0, %v867
        %v869 = vpop.f32.mrb[0].mxu0
        %v870 = vadd.f32 0.0, %v869
        %871 = vdwg.mxu0
        %v873 = vsel %vm292, %v823, 0
        %875 = vmatprep.subr.bf16.mxu0 %v800
        %876 = vmatpush1.bf16.msra.mxu0 %v799
        %877 = vmatprep.subr.bf16.mxu0 0
        %878 = vmatpush1.bf16.msra.mxu0 0
        %879 = vmatprep.subr.bf16.mxu0 0
        %880 = vmatpush1.bf16.msra.mxu0 0
        %881 = vmatprep.subr.bf16.mxu0 0
        %882 = vmatpush1.bf16.msra.mxu0 0
        %883 = vmatprep.subr.bf16.mxu0 0
        %884 = vmatpush1.bf16.msra.mxu0 0
        %885 = vmatprep.subr.bf16.mxu0 0
        %886 = vmatpush1.bf16.msra.mxu0 0
        %887 = vmatprep.subr.bf16.mxu0 0
        %888 = vmatpush1.bf16.msra.mxu0 0
        %889 = vmatprep.subr.bf16.mxu0 0
        %890 = vmatpush1.bf16.msra.mxu0 0
        %891 = vmatprep.subr.bf16.mxu0 0
        %892 = vmatpush1.bf16.msra.mxu0 0
        %893 = vmatprep.subr.bf16.mxu0 0
        %894 = vmatpush1.bf16.msra.mxu0 0
        %895 = vmatprep.subr.bf16.mxu0 0
        %896 = vmatpush1.bf16.msra.mxu0 0
        %897 = vmatprep.subr.bf16.mxu0 0
        %898 = vmatpush1.bf16.msra.mxu0 0
        %899 = vmatprep.subr.bf16.mxu0 0
        %900 = vmatpush1.bf16.msra.mxu0 0
        %901 = vmatprep.subr.bf16.mxu0 0
        %902 = vmatpush1.bf16.msra.mxu0 0
        %903 = vmatprep.subr.bf16.mxu0 0
        %904 = vmatpush1.bf16.msra.mxu0 0
        %905 = vmatprep.subr.bf16.mxu0 0
        %906 = vmatpush1.bf16.msra.mxu0 0
        %907 = vmatprep.mubr.bf16.mxu0 0
        %908 = vmatmul.mubr.bf16.gmra.mrb[0].mxu0 %v873
        %v909 = vpop.f32.mrb[0].mxu0
        %v910 = vadd.f32 %v864, %v909
        %v911 = vpop.f32.mrb[0].mxu0
        %v912 = vadd.f32 %v866, %v911
        %v913 = vpop.f32.mrb[0].mxu0
        %v914 = vadd.f32 %v868, %v913
        %v915 = vpop.f32.mrb[0].mxu0
        %v916 = vadd.f32 %v870, %v915
        %917 = vdwg.mxu0
        %v918 = vpack.c.bf16 %v763, %v761
        %v919 = vpack.c.bf16 %v764, %v762
        %920 = vrot.lane.b32.xlu0 %v823, 96
        %v921 = vpop.permute.xlu0 %920
        %v923 = vsel %vm292, %v921, 0
        %925 = vmatprep.subr.bf16.mxu0 %v919
        %926 = vmatpush1.bf16.msra.mxu0 %v918
        %927 = vmatprep.subr.bf16.mxu0 0
        %928 = vmatpush1.bf16.msra.mxu0 0
        %929 = vmatprep.subr.bf16.mxu0 0
        %930 = vmatpush1.bf16.msra.mxu0 0
        %931 = vmatprep.subr.bf16.mxu0 0
        %932 = vmatpush1.bf16.msra.mxu0 0
        %933 = vmatprep.subr.bf16.mxu0 0
        %934 = vmatpush1.bf16.msra.mxu0 0
        %935 = vmatprep.subr.bf16.mxu0 0
        %936 = vmatpush1.bf16.msra.mxu0 0
        %937 = vmatprep.subr.bf16.mxu0 0
        %938 = vmatpush1.bf16.msra.mxu0 0
        %939 = vmatprep.subr.bf16.mxu0 0
        %940 = vmatpush1.bf16.msra.mxu0 0
        %941 = vmatprep.subr.bf16.mxu0 0
        %942 = vmatpush1.bf16.msra.mxu0 0
        %943 = vmatprep.subr.bf16.mxu0 0
        %944 = vmatpush1.bf16.msra.mxu0 0
        %945 = vmatprep.subr.bf16.mxu0 0
        %946 = vmatpush1.bf16.msra.mxu0 0
        %947 = vmatprep.subr.bf16.mxu0 0
        %948 = vmatpush1.bf16.msra.mxu0 0
        %949 = vmatprep.subr.bf16.mxu0 0
        %950 = vmatpush1.bf16.msra.mxu0 0
        %951 = vmatprep.subr.bf16.mxu0 0
        %952 = vmatpush1.bf16.msra.mxu0 0
        %953 = vmatprep.subr.bf16.mxu0 0
        %954 = vmatpush1.bf16.msra.mxu0 0
        %955 = vmatprep.subr.bf16.mxu0 0
        %956 = vmatpush1.bf16.msra.mxu0 0
        %957 = vmatprep.mubr.bf16.mxu0 0
        %958 = vmatmul.mubr.bf16.gmra.mrb[0].mxu0 %v923
        %v959 = vpop.f32.mrb[0].mxu0
        %v960 = vadd.f32 0.0, %v959
        %v961 = vpop.f32.mrb[0].mxu0
        %v962 = vadd.f32 0.0, %v961
        %v963 = vpop.f32.mrb[0].mxu0
        %v964 = vadd.f32 0.0, %v963
        %v965 = vpop.f32.mrb[0].mxu0
        %v966 = vadd.f32 0.0, %v965
        %967 = vdwg.mxu0
        %v968 = vadd.f32 %v910, %v960
        %v969 = vadd.f32 %v912, %v962
        %v970 = vadd.f32 %v914, %v964
        %v971 = vadd.f32 %v916, %v966
        %973 = vset.pattern.permute.xlu0 0
        %974 = vperm.xlu0 %973, %v765
        %v975 = vpop.permute.xlu0 %974
        %978 = vset.pattern.permute.xlu0 0
        %979 = vperm.xlu0 %978, %v766
        %v980 = vpop.permute.xlu0 %979
        %v982 = vadd.f32 %v968, %v975
        %v983 = vadd.f32 %v969, %v975
        %v984 = vadd.f32 %v970, %v980
        %v985 = vadd.f32 %v971, %v980
        %vm986 = vcmp.ge.f32.partialorder %v982, 0.0
        %vm987 = vcmp.ge.f32.partialorder %v983, 0.0
        %vm988 = vcmp.ge.f32.partialorder %v984, 0.0
        %vm989 = vcmp.ge.f32.partialorder %v985, 0.0
        %v990 = vmul.f32 %v982, 0.01
        %v991 = vmul.f32 %v983, 0.01
        %v992 = vmul.f32 %v984, 0.01
        %v993 = vmul.f32 %v985, 0.01
        %v994 = vsel %vm986, %v982, %v990
        %v995 = vsel %vm987, %v983, %v991
        %v996 = vsel %vm988, %v984, %v992
        %v997 = vsel %vm989, %v985, %v993
        %v998 = vld [vmem:[%s2 + $0x40] sm:$0xff]
        %v999 = vld [vmem:[%s2 + $0x48] sm:$0xff]
        %v1000 = vld [vmem:[#allocation2 + $0x20] sm:$0xf]
        %v1001 = vld [vmem:[#allocation2 + $0x24] sm:$0xf]
        %1002 = vrot.lane.b32.xlu0 %v994, 4
        %v1003 = vpop.permute.xlu0 %1002
        %1004 = vrot.lane.b32.xlu0 %v996, 4
        %v1005 = vpop.permute.xlu0 %1004
        %1006 = vrot.lane.b32.xlu0 %v995, 4
        %v1007 = vpop.permute.xlu0 %1006
        %1008 = vrot.lane.b32.xlu0 %v997, 4
        %v1009 = vpop.permute.xlu0 %1008
        %v1010 = vsel %vm777, %v1003, %v1007
        %v1011 = vsel %vm777, %v1005, %v1009
        %v1012 = vsel %vm777, %v1007, %v1003
        %v1013 = vsel %vm777, %v1009, %v1005
        %v1014 = vmul.f32 %v1012, %v788
        %v1015 = vmul.f32 %v1010, %v792
        %v1016 = vmul.f32 %v1013, %v788
        %v1017 = vmul.f32 %v1011, %v792
        %v1018 = vpack.c.bf16 %v1016, %v1014
        %v1019 = vpack.c.bf16 %v1017, %v1015
        %1020 = vrot.lane.b32.xlu0 %v994, 2
        %v1021 = vpop.permute.xlu0 %1020
        %1022 = vrot.lane.b32.xlu0 %v996, 2
        %v1023 = vpop.permute.xlu0 %1022
        %1024 = vrot.lane.b32.xlu0 %v995, 2
        %v1025 = vpop.permute.xlu0 %1024
        %1026 = vrot.lane.b32.xlu0 %v997, 2
        %v1027 = vpop.permute.xlu0 %1026
        %v1028 = vsel %vm230, %v1021, %v1025
        %v1029 = vsel %vm230, %v1023, %v1027
        %v1030 = vsel %vm230, %v1025, %v1021
        %v1031 = vsel %vm230, %v1027, %v1023
        %v1032 = vmul.f32 %v1030, %v241
        %v1033 = vmul.f32 %v1028, %v245
        %v1034 = vmul.f32 %v1031, %v241
        %v1035 = vmul.f32 %v1029, %v245
        %v1036 = vpack.c.bf16 %v1034, %v1032
        %v1037 = vpack.c.bf16 %v1035, %v1033
        %v1040 = vunpack.c.l.b16 %v1000
        %v1041 = vunpack.c.l.b16 %v1001
        %v1042 = vpack.c.b16 %v1041, %v1040
        %1043 = vrot.lane.b32.xlu0 %v1042, 112
        %v1044 = vpop.permute.xlu0 %1043
        %v1046 = vsel %vm292, %v1044, 0
        %1048 = vmatprep.subr.bf16.mxu0 %v1037
        %1049 = vmatpush1.bf16.msra.mxu0 %v1036
        %1050 = vmatprep.subr.bf16.mxu0 0
        %1051 = vmatpush1.bf16.msra.mxu0 0
        %1052 = vmatprep.subr.bf16.mxu0 0
        %1053 = vmatpush1.bf16.msra.mxu0 0
        %1054 = vmatprep.subr.bf16.mxu0 0
        %1055 = vmatpush1.bf16.msra.mxu0 0
        %1056 = vmatprep.subr.bf16.mxu0 0
        %1057 = vmatpush1.bf16.msra.mxu0 0
        %1058 = vmatprep.subr.bf16.mxu0 0
        %1059 = vmatpush1.bf16.msra.mxu0 0
        %1060 = vmatprep.subr.bf16.mxu0 0
        %1061 = vmatpush1.bf16.msra.mxu0 0
        %1062 = vmatprep.subr.bf16.mxu0 0
        %1063 = vmatpush1.bf16.msra.mxu0 0
        %1064 = vmatprep.subr.bf16.mxu0 0
        %1065 = vmatpush1.bf16.msra.mxu0 0
        %1066 = vmatprep.subr.bf16.mxu0 0
        %1067 = vmatpush1.bf16.msra.mxu0 0
        %1068 = vmatprep.subr.bf16.mxu0 0
        %1069 = vmatpush1.bf16.msra.mxu0 0
        %1070 = vmatprep.subr.bf16.mxu0 0
        %1071 = vmatpush1.bf16.msra.mxu0 0
        %1072 = vmatprep.subr.bf16.mxu0 0
        %1073 = vmatpush1.bf16.msra.mxu0 0
        %1074 = vmatprep.subr.bf16.mxu0 0
        %1075 = vmatpush1.bf16.msra.mxu0 0
        %1076 = vmatprep.subr.bf16.mxu0 0
        %1077 = vmatpush1.bf16.msra.mxu0 0
        %1078 = vmatprep.subr.bf16.mxu0 0
        %1079 = vmatpush1.bf16.msra.mxu0 0
        %1080 = vmatprep.mubr.bf16.mxu0 0
        %1081 = vmatmul.mubr.bf16.gmra.mrb[0].mxu0 %v1046
        %v1082 = vpop.f32.mrb[0].mxu0
        %v1083 = vadd.f32 0.0, %v1082
        %v1084 = vpop.f32.mrb[0].mxu0
        %v1085 = vadd.f32 0.0, %v1084
        %v1086 = vpop.f32.mrb[0].mxu0
        %v1087 = vadd.f32 0.0, %v1086
        %v1088 = vpop.f32.mrb[0].mxu0
        %v1089 = vadd.f32 0.0, %v1088
        %1090 = vdwg.mxu0
        %v1092 = vsel %vm292, %v1042, 0
        %1094 = vmatprep.subr.bf16.mxu0 %v1019
        %1095 = vmatpush1.bf16.msra.mxu0 %v1018
        %1096 = vmatprep.subr.bf16.mxu0 0
        %1097 = vmatpush1.bf16.msra.mxu0 0
        %1098 = vmatprep.subr.bf16.mxu0 0
        %1099 = vmatpush1.bf16.msra.mxu0 0
        %1100 = vmatprep.subr.bf16.mxu0 0
        %1101 = vmatpush1.bf16.msra.mxu0 0
        %1102 = vmatprep.subr.bf16.mxu0 0
        %1103 = vmatpush1.bf16.msra.mxu0 0
        %1104 = vmatprep.subr.bf16.mxu0 0
        %1105 = vmatpush1.bf16.msra.mxu0 0
        %1106 = vmatprep.subr.bf16.mxu0 0
        %1107 = vmatpush1.bf16.msra.mxu0 0
        %1108 = vmatprep.subr.bf16.mxu0 0
        %1109 = vmatpush1.bf16.msra.mxu0 0
        %1110 = vmatprep.subr.bf16.mxu0 0
        %1111 = vmatpush1.bf16.msra.mxu0 0
        %1112 = vmatprep.subr.bf16.mxu0 0
        %1113 = vmatpush1.bf16.msra.mxu0 0
        %1114 = vmatprep.subr.bf16.mxu0 0
        %1115 = vmatpush1.bf16.msra.mxu0 0
        %1116 = vmatprep.subr.bf16.mxu0 0
        %1117 = vmatpush1.bf16.msra.mxu0 0
        %1118 = vmatprep.subr.bf16.mxu0 0
        %1119 = vmatpush1.bf16.msra.mxu0 0
        %1120 = vmatprep.subr.bf16.mxu0 0
        %1121 = vmatpush1.bf16.msra.mxu0 0
        %1122 = vmatprep.subr.bf16.mxu0 0
        %1123 = vmatpush1.bf16.msra.mxu0 0
        %1124 = vmatprep.subr.bf16.mxu0 0
        %1125 = vmatpush1.bf16.msra.mxu0 0
        %1126 = vmatprep.mubr.bf16.mxu0 0
        %1127 = vmatmul.mubr.bf16.gmra.mrb[0].mxu0 %v1092
        %v1128 = vpop.f32.mrb[0].mxu0
        %v1129 = vadd.f32 %v1083, %v1128
        %v1130 = vpop.f32.mrb[0].mxu0
        %v1131 = vadd.f32 %v1085, %v1130
        %v1132 = vpop.f32.mrb[0].mxu0
        %v1133 = vadd.f32 %v1087, %v1132
        %v1134 = vpop.f32.mrb[0].mxu0
        %v1135 = vadd.f32 %v1089, %v1134
        %1136 = vdwg.mxu0
        %v1137 = vpack.c.bf16 %v996, %v994
        %v1138 = vpack.c.bf16 %v997, %v995
        %1139 = vrot.lane.b32.xlu0 %v1042, 96
        %v1140 = vpop.permute.xlu0 %1139
        %v1142 = vsel %vm292, %v1140, 0
        %1144 = vmatprep.subr.bf16.mxu0 %v1138
        %1145 = vmatpush1.bf16.msra.mxu0 %v1137
        %1146 = vmatprep.subr.bf16.mxu0 0
        %1147 = vmatpush1.bf16.msra.mxu0 0
        %1148 = vmatprep.subr.bf16.mxu0 0
        %1149 = vmatpush1.bf16.msra.mxu0 0
        %1150 = vmatprep.subr.bf16.mxu0 0
        %1151 = vmatpush1.bf16.msra.mxu0 0
        %1152 = vmatprep.subr.bf16.mxu0 0
        %1153 = vmatpush1.bf16.msra.mxu0 0
        %1154 = vmatprep.subr.bf16.mxu0 0
        %1155 = vmatpush1.bf16.msra.mxu0 0
        %1156 = vmatprep.subr.bf16.mxu0 0
        %1157 = vmatpush1.bf16.msra.mxu0 0
        %1158 = vmatprep.subr.bf16.mxu0 0
        %1159 = vmatpush1.bf16.msra.mxu0 0
        %1160 = vmatprep.subr.bf16.mxu0 0
        %1161 = vmatpush1.bf16.msra.mxu0 0
        %1162 = vmatprep.subr.bf16.mxu0 0
        %1163 = vmatpush1.bf16.msra.mxu0 0
        %1164 = vmatprep.subr.bf16.mxu0 0
        %1165 = vmatpush1.bf16.msra.mxu0 0
        %1166 = vmatprep.subr.bf16.mxu0 0
        %1167 = vmatpush1.bf16.msra.mxu0 0
        %1168 = vmatprep.subr.bf16.mxu0 0
        %1169 = vmatpush1.bf16.msra.mxu0 0
        %1170 = vmatprep.subr.bf16.mxu0 0
        %1171 = vmatpush1.bf16.msra.mxu0 0
        %1172 = vmatprep.subr.bf16.mxu0 0
        %1173 = vmatpush1.bf16.msra.mxu0 0
        %1174 = vmatprep.subr.bf16.mxu0 0
        %1175 = vmatpush1.bf16.msra.mxu0 0
        %1176 = vmatprep.mubr.bf16.mxu0 0
        %1177 = vmatmul.mubr.bf16.gmra.mrb[0].mxu0 %v1142
        %v1178 = vpop.f32.mrb[0].mxu0
        %v1179 = vadd.f32 0.0, %v1178
        %v1180 = vpop.f32.mrb[0].mxu0
        %v1181 = vadd.f32 0.0, %v1180
        %v1182 = vpop.f32.mrb[0].mxu0
        %v1183 = vadd.f32 0.0, %v1182
        %v1184 = vpop.f32.mrb[0].mxu0
        %v1185 = vadd.f32 0.0, %v1184
        %1186 = vdwg.mxu0
        %v1187 = vadd.f32 %v1129, %v1179
        %v1188 = vadd.f32 %v1131, %v1181
        %v1189 = vadd.f32 %v1133, %v1183
        %v1190 = vadd.f32 %v1135, %v1185
        %1192 = vset.pattern.permute.xlu0 0
        %1193 = vperm.xlu0 %1192, %v998
        %v1194 = vpop.permute.xlu0 %1193
        %1197 = vset.pattern.permute.xlu0 0
        %1198 = vperm.xlu0 %1197, %v999
        %v1199 = vpop.permute.xlu0 %1198
        %v1201 = vadd.f32 %v1187, %v1194
        %v1202 = vadd.f32 %v1188, %v1194
        %v1203 = vadd.f32 %v1189, %v1199
        %v1204 = vadd.f32 %v1190, %v1199
        %vm1205 = vcmp.ge.f32.partialorder %v1201, 0.0
        %vm1206 = vcmp.ge.f32.partialorder %v1202, 0.0
        %vm1207 = vcmp.ge.f32.partialorder %v1203, 0.0
        %vm1208 = vcmp.ge.f32.partialorder %v1204, 0.0
        %v1209 = vmul.f32 %v1201, 0.01
        %v1210 = vmul.f32 %v1202, 0.01
        %v1211 = vmul.f32 %v1203, 0.01
        %v1212 = vmul.f32 %v1204, 0.01
        %v1213 = vsel %vm1205, %v1201, %v1209
        %v1214 = vsel %vm1206, %v1202, %v1210
        %v1215 = vsel %vm1207, %v1203, %v1211
        %v1216 = vsel %vm1208, %v1204, %v1212
        %v1217 = vld [vmem:[#allocation2 + $0x28] sm:$0xf]
        %v1218 = vld [vmem:[#allocation2 + $0x2c] sm:$0xf]
        %v1219 = vld [vmem:[%s2 + $0x50] sm:$0xff]
        %v1220 = vld [vmem:[%s2 + $0x58] sm:$0xff]
        %1222 = vset.pattern.permute.xlu0 0
        %1223 = vperm.xlu0 %1222, %v1219
        %v1224 = vpop.permute.xlu0 %1223
        %1227 = vset.pattern.permute.xlu0 0
        %1228 = vperm.xlu0 %1227, %v1220
        %v1229 = vpop.permute.xlu0 %1228
        %v1233 = vunpack.c.l.b16 %v1217
        %v1234 = vunpack.c.l.b16 %v1218
        %v1235 = vpack.c.b16 %v1234, %v1233
        %v1237 = vsel %vm292, %v1235, 0
        %1239 = vmatprep.subr.bf16.mxu0 %v919
        %1240 = vmatpush1.bf16.msra.mxu0 %v918
        %1241 = vmatprep.subr.bf16.mxu0 0
        %1242 = vmatpush1.bf16.msra.mxu0 0
        %1243 = vmatprep.subr.bf16.mxu0 0
        %1244 = vmatpush1.bf16.msra.mxu0 0
        %1245 = vmatprep.subr.bf16.mxu0 0
        %1246 = vmatpush1.bf16.msra.mxu0 0
        %1247 = vmatprep.subr.bf16.mxu0 0
        %1248 = vmatpush1.bf16.msra.mxu0 0
        %1249 = vmatprep.subr.bf16.mxu0 0
        %1250 = vmatpush1.bf16.msra.mxu0 0
        %1251 = vmatprep.subr.bf16.mxu0 0
        %1252 = vmatpush1.bf16.msra.mxu0 0
        %1253 = vmatprep.subr.bf16.mxu0 0
        %1254 = vmatpush1.bf16.msra.mxu0 0
        %1255 = vmatprep.subr.bf16.mxu0 0
        %1256 = vmatpush1.bf16.msra.mxu0 0
        %1257 = vmatprep.subr.bf16.mxu0 0
        %1258 = vmatpush1.bf16.msra.mxu0 0
        %1259 = vmatprep.subr.bf16.mxu0 0
        %1260 = vmatpush1.bf16.msra.mxu0 0
        %1261 = vmatprep.subr.bf16.mxu0 0
        %1262 = vmatpush1.bf16.msra.mxu0 0
        %1263 = vmatprep.subr.bf16.mxu0 0
        %1264 = vmatpush1.bf16.msra.mxu0 0
        %1265 = vmatprep.subr.bf16.mxu0 0
        %1266 = vmatpush1.bf16.msra.mxu0 0
        %1267 = vmatprep.subr.bf16.mxu0 0
        %1268 = vmatpush1.bf16.msra.mxu0 0
        %1269 = vmatprep.subr.bf16.mxu0 0
        %1270 = vmatpush1.bf16.msra.mxu0 0
        %1271 = vmatprep.mubr.bf16.mxu0 0
        %1272 = vmatmul.mubr.bf16.gmra.mrb[0].mxu0 %v1237
        %v1273 = vpop.f32.mrb[0].mxu0
        %v1274 = vadd.f32 %v1224, %v1273
        %v1275 = vpop.f32.mrb[0].mxu0
        %v1276 = vadd.f32 %v1224, %v1275
        %v1277 = vpop.f32.mrb[0].mxu0
        %v1278 = vadd.f32 %v1229, %v1277
        %v1279 = vpop.f32.mrb[0].mxu0
        %v1280 = vadd.f32 %v1229, %v1279
        %1281 = vdwg.mxu0
        %v1282 = vadd.f32 %v1213, %v1274
        %v1283 = vadd.f32 %v1214, %v1276
        %v1284 = vadd.f32 %v1215, %v1278
        %v1285 = vadd.f32 %v1216, %v1280
        %vm1286 = vcmp.ge.f32.partialorder %v1282, 0.0
        %vm1287 = vcmp.ge.f32.partialorder %v1283, 0.0
        %vm1288 = vcmp.ge.f32.partialorder %v1284, 0.0
        %vm1289 = vcmp.ge.f32.partialorder %v1285, 0.0
        %v1290 = vmul.f32 %v1282, 0.01
        %v1291 = vmul.f32 %v1283, 0.01
        %v1292 = vmul.f32 %v1284, 0.01
        %v1293 = vmul.f32 %v1285, 0.01
        %v1294 = vsel %vm1286, %v1282, %v1290
        %v1295 = vsel %vm1287, %v1283, %v1291
        %v1296 = vsel %vm1288, %v1284, %v1292
        %v1297 = vsel %vm1289, %v1285, %v1293
        %1298 = vst [vmem:[%s205] sm:$0xff] %v1294
        %1299 = vst [vmem:[%s205 + $0x8] sm:$0xff] %v1295
        %1300 = vst [vmem:[%s205 + $0x10] sm:$0xff] %v1296
        %1301 = vst [vmem:[%s205 + $0x18] sm:$0xff] %v1297
        %s1302 = sand.u32 %s116, 1
        %s1303 = scalar_lea.sflag [#allocation4], %s1302
        %s1304 = sand.u32 %s116, 1
        %s1305 = smul.addr %s1304, 32
        %s1306 = scalar_lea.vmem [#allocation5], %s1305
        // Predicated region
        $region41: #{tpu_custom_call.1} parent=35 // pred_check
          %p1307 = pneg %p126
        $region42: #{tpu_custom_call.1} parent=35 // pred_check_branch
          %1309 = sbr.rel (%p1307) target = $region44
        $region43: #{tpu_custom_call.1} parent=35 // pred_region
          %s1311 = ssub.s32 512, 512
          %1312 = vsyncadd %s1303, %s1311
          %s1313 = smul.addr %s19, 4
          %s1314 = smul.addr %s1313, 128
          %s1315 = scalar_lea.hbm %s4, %s1314
          %s1316 = sshll.u32 %s1306, 4
          %s1317 = int_to_ptr.vmem [resolvable:$true] %s1316
          %1322 = dma.vmem_to_hbm [thread:$0]  %s1317, 512, %s1315, %s1303, 256, 256, 16
        $region44: #{tpu_custom_call.1} parent=35 // pred_fallthru
          _
      $region36: #{tpu_custom_call.1} parent=5 // pred_fallthru
        _
      %p1323 = scmp.le.s32.totalorder 2, %s14
      // Predicated region
      $region45: #{tpu_custom_call.1} parent=5 // pred_check
        %p1324 = pneg %p1323
      $region46: #{tpu_custom_call.1} parent=5 // pred_check_branch
        %1326 = sbr.rel (%p1324) target = $region48
      $region47: #{tpu_custom_call.1} parent=5 // pred_region
        %s1327 = ssub.s32 %s14, 2
        // Predicated region
        $region49: #{tpu_custom_call.1} parent=47 // pred_check
          %p1328 = pneg %p132
        $region50: #{tpu_custom_call.1} parent=47 // pred_check_branch
          %1330 = sbr.rel (%p1328) target = $region52
        $region51: #{tpu_custom_call.1} parent=47 // pred_region
          %s1331 = sand.u32 %s117, 1
          %s1332 = scalar_lea.sflag [#allocation4], %s1331
          %s1333 = sand.u32 %s117, 1
          %s1334 = smul.addr %s1333, 32
          %s1335 = scalar_lea.vmem [#allocation5], %s1334
          %1336 = dma.done %s1332, 512
        $region52: #{tpu_custom_call.1} parent=47 // pred_fallthru
          _
      $region48: #{tpu_custom_call.1} parent=5 // pred_fallthru
        _
    $region6: #{tpu_custom_call.1} parent=1 // loop_footer
      %s18 = sadd.s32 1, %s14
    $region7: #{tpu_custom_call.1} parent=1 // loop_footer_branch
      %13 = sbr.rel target = $region3
    $region8: #{tpu_custom_call.1} parent=1 // loop_exit
      _
    %1337 = vsyncpa [#allocation3], 1
    %s1338 = scalar_lea.sflag [#allocation3], 1
    %1339 = vsyncpa %s1338, 1
    %1340 = vsyncpa [#allocation4], 1
    %s1341 = scalar_lea.sflag [#allocation4], 1
    %1342 = vsyncpa %s1341, 1

</llo_original>
